<compile_context>
chip_gen: v6e
topology: v6e:2x2x1
jax: 0.10.0
libtpu: 0.0.40
codegen_flags: <defaults>
</compile_context>

<pallas_src>
import numpy as np
import jax
import jax.numpy as jnp
from jax import lax
from jax.experimental import pallas as pl
from jax.experimental.pallas import tpu as pltpu

# ---------------- configuration (ScConv(op_channel=16, group_num=4)) -------
OP_C = 16          # op_channel
GROUP_NUM = 4      # group_num for GroupBatchnorm2d (c_num >= group_num)
GATE_T = 0.5       # gate_treshold
ALPHA = 0.5
SQUEEZE = 2        # squeeze_radio
GROUP_SIZE = 2     # groups of GWC
GKS = 3            # group_kernel_size
EPS = 1e-10

N, H, W = 2, 16, 16
HW = H * W

UP_C = int(ALPHA * OP_C)        # 8
LOW_C = OP_C - UP_C             # 8
UP_S = UP_C // SQUEEZE          # 4
LOW_S = LOW_C // SQUEEZE        # 4
CPG = OP_C // GROUP_NUM         # channels per GN group = 4

# sigmoid(z) >= GATE_T  <=>  z >= logit(GATE_T)   (== 0.0 for GATE_T = 0.5)
THR = float(np.log(GATE_T / (1.0 - GATE_T)))

# tap order (ky-major) shared by the kernel staging, packed weight and masks
TAPS = tuple((ky, kx) for ky in range(GKS) for kx in range(GKS))


# ---------------------------- fused Pallas kernel ---------------------------
def _make_kernel(B):
    BC = B * OP_C                  # rows per block (batch * channels)
    BUS = B * UP_S                 # up-branch squeezed rows (all batches)
    BLS = B * LOW_S                # low-branch squeezed rows
    BSQ = B * (UP_S + LOW_S)
    n_elem = float(CPG * HW)

    def kernel(x_ref, slab_ref, wsq_ref, wbig_ref, mask_ref, out_ref, stage_ref):
        x = x_ref[...]                                   # (BC, HW)
        agg = slab_ref[:, 0:BC]                          # same (batch, GN-group) indicator
        bind = slab_ref[:, BC:2 * BC]                    # same-batch indicator (softmax sum)
        gw = slab_ref[:, 2 * BC:2 * BC + 1]              # gamma * w_gamma      (BC, 1)
        tb = slab_ref[:, 2 * BC + 1:2 * BC + 2]          # beta  * w_gamma      (BC, 1)
        bg = slab_ref[:, 2 * BC + 2:2 * BC + 3]          # GWC bias             (BC, 1)

        # ---- SRU group statistics: one lane-reduce pass + ONE tiny agg matmul ----
        csum = jnp.sum(x, axis=1, keepdims=True)                          # (BC, 1)
        csq = jnp.sum(x * x, axis=1, keepdims=True)                       # (BC, 1)
        gstat = jnp.dot(agg, jnp.concatenate([csum, csq], axis=1),
                        preferred_element_type=jnp.float32)               # (BC, 2)
        mean = gstat[:, 0:1] * (1.0 / n_elem)
        var = (gstat[:, 1:2] - n_elem * mean * mean) * (1.0 / (n_elem - 1.0))
        std = jnp.sqrt(var)                              # unbiased, like torch.std

        # ---- gate: no sigmoid, no materialised gn ----
        s = gw / (std + EPS)                             # (BC, 1) exact tiny divide
        z = (x - mean) * s + tb                          # == gn * w_gamma
        x1 = jnp.where(z >= THR, x, 0.0)                 # informative part

        # ---- squeeze1/squeeze2 with the SRU reconstruct folded into the weights:
        #   sq = W1 @ x1 + W2 @ (x - x1) = W2 @ x + (W1 - W2) @ x1
        sq = (jnp.dot(wsq_ref[BSQ:2 * BSQ, :], x, preferred_element_type=jnp.float32)
              + jnp.dot(wsq_ref[0:BSQ, :], x1, preferred_element_type=jnp.float32))
        up_all = sq[:BUS, :]                             # (B*UP_S, HW)
        low_all = sq[BUS:, :]                            # (B*LOW_S, HW)

        # ---- stage 9 shifted + edge-masked taps and low_all, then ONE matmul ----
        for k, (ky, kx) in enumerate(TAPS):
            dy, dx = ky - GKS // 2, kx - GKS // 2
            if dy == 0 and dx == 0:
                tap = up_all                                             # centre tap
            else:
                tap = pltpu.roll(up_all, shift=(-(dy * W + dx)) % HW, axis=1)
                tap = tap * mask_ref[k:k + 1, :]                         # static 0/1 mask
            stage_ref[k * BUS:(k + 1) * BUS, :] = tap
        stage_ref[GKS * GKS * BUS:GKS * GKS * BUS + BLS, :] = low_all

        # [Y1; Y2] for every batch in the block in a single MXU push
        yall = jnp.dot(wbig_ref[...], stage_ref[...],
                       preferred_element_type=jnp.float32)               # (2*BC, HW)
        y1 = yall[:BC, :] + bg
        y2 = yall[BC:, :]

        # ---- adaptive avg pool + per-batch channel softmax + split-add ----
        m1 = jnp.mean(y1, axis=1, keepdims=True)                         # (BC, 1)
        m2 = jnp.mean(y2, axis=1, keepdims=True)
        mx = jnp.maximum(jnp.max(m1), jnp.max(m2))       # global shift is per-batch safe
        e1 = jnp.exp(m1 - mx)
        e2 = jnp.exp(m2 - mx)
        den = jnp.dot(bind, e1 + e2, preferred_element_type=jnp.float32)  # per-batch Z
        inv = 1.0 / den                                  # exact (off the hot path)
        out_ref[...] = (e1 * inv) * y1 + (e2 * inv) * y2

    return kernel


# --------------------------- parameter packing -------------------------------
def _pack_params(p, B):
    C = OP_C
    BC = B * C
    gamma = p["gamma"]
    w_gamma = gamma / jnp.sum(gamma)

    # slab: [ GN same-group indicator | same-batch indicator | per-channel scalars ]
    agg = np.kron(np.eye(B * GROUP_NUM, dtype=np.float32),
                  np.ones((CPG, CPG), np.float32))                       # (BC, BC)
    bind = np.kron(np.eye(B, dtype=np.float32),
                   np.ones((C, C), np.float32))                          # (BC, BC)
    scal = jnp.stack([gamma * w_gamma, p["beta"] * w_gamma, p["bg"]], axis=1)
    scal = jnp.tile(scal, (B, 1))                                        # (BC, 3)
    slab = jnp.concatenate([jnp.asarray(agg), jnp.asarray(bind), scal], axis=1)

    # squeeze weights with the SRU reconstruct (per-batch half-channel swap) folded in
    SQ = UP_S + LOW_S
    w1 = jnp.zeros((B * SQ, BC), jnp.float32)
    for b in range(B):
        w1 = w1.at[b * UP_S:(b + 1) * UP_S, b * C:b * C + UP_C].set(p["ws1"])
        w1 = w1.at[B * UP_S + b * LOW_S:B * UP_S + (b + 1) * LOW_S,
                   b * C + UP_C:(b + 1) * C].set(p["ws2"])
    perm = np.eye(C, dtype=np.float32)[(np.arange(C) + C // 2) % C]      # half swap
    perm = jnp.asarray(np.kron(np.eye(B, dtype=np.float32), perm))
    w_base = jnp.dot(w1, perm)                    # applied to x       (= W2)
    w_gate = w1 - w_base                          # applied to x1      (= W1 - W2)
    wsq = jnp.concatenate([w_gate, w_base], axis=0)                     # (2*B*SQ, BC)

    # dense GWC weight (PWC1 folded into centre tap) + [PWC2; I] as one block weight
    out_pg, in_pg = OP_C // GROUP_SIZE, UP_S // GROUP_SIZE
    wg_dense = jnp.zeros((OP_C, UP_S, GKS, GKS), jnp.float32)
    for g in range(GROUP_SIZE):
        wg_dense = wg_dense.at[g * out_pg:(g + 1) * out_pg,
                               g * in_pg:(g + 1) * in_pg].set(
            p["wg"][g * out_pg:(g + 1) * out_pg])
    wg_dense = wg_dense.at[:, :, GKS // 2, GKS // 2].add(p["wp1"])
    wp2e = jnp.concatenate([p["wp2"], jnp.eye(LOW_S, dtype=jnp.float32)], axis=0)

    k_stage = GKS * GKS * B * UP_S + B * LOW_S
    wbig = jnp.zeros((2 * BC, k_stage), jnp.float32)
    for k, (ky, kx) in enumerate(TAPS):
        wk = wg_dense[:, :, ky, kx]                                      # (OP_C, UP_S)
        for b in range(B):
            wbig = wbig.at[b * OP_C:(b + 1) * OP_C,
                           k * B * UP_S + b * UP_S:
                           k * B * UP_S + (b + 1) * UP_S].set(wk)
    for b in range(B):
        wbig = wbig.at[BC + b * OP_C:BC + (b + 1) * OP_C,
                       GKS * GKS * B * UP_S + b * LOW_S:
                       GKS * GKS * B * UP_S + (b + 1) * LOW_S].set(wp2e)

    # static 0/1 edge-validity masks for the 9 taps (depend only on H, W, dy, dx)
    lane = np.arange(HW)
    col, row = lane % W, lane // W
    masks = np.stack([(((col + kx - GKS // 2) >= 0) & ((col + kx - GKS // 2) < W) &
                       ((row + ky - GKS // 2) >= 0) & ((row + ky - GKS // 2) < H))
                      .astype(np.float32) for (ky, kx) in TAPS])         # (9, HW)
    return slab, wsq, wbig, jnp.asarray(masks), k_stage


def _pick_batch_block(n):
    # whole batch in one grid step on single-TC v5e/v6e (kills per-step grid
    # overhead); split across the 2 TensorCores on v7x-like parts.
    try:
        kind = jax.devices()[0].device_kind.lower()
    except Exception:
        kind = ""
    if ("v7" in kind or "7x" in kind) and n % 2 == 0:
        return max(1, n // 2)
    return n


# ------------------------------- wrapper ------------------------------------
def scconv_pallas(x, p, batch_block=None):
    n, c, h, w = x.shape
    hw = h * w
    assert c == OP_C and h == H and w == W
    B = _pick_batch_block(n) if batch_block is None else batch_block
    assert n % B == 0
    BC = B * c
    slab, wsq, wbig, masks, k_stage = _pack_params(p, B)
    x2 = x.reshape(n * c, hw)

    out = pl.pallas_call(
        _make_kernel(B),
        out_shape=jax.ShapeDtypeStruct((n * c, hw), jnp.float32),
        grid_spec=pltpu.PrefetchScalarGridSpec(
            num_scalar_prefetch=0,
            grid=(n // B,),
            in_specs=[
                pl.BlockSpec((BC, hw), lambda i: (i, 0)),          # x (batch block)
                pl.BlockSpec(slab.shape, lambda i: (0, 0)),        # agg | bind | scalars
                pl.BlockSpec(wsq.shape, lambda i: (0, 0)),         # [W1-W2 ; W2]
                pl.BlockSpec(wbig.shape, lambda i: (0, 0)),        # fused GWC/PWC weight
                pl.BlockSpec(masks.shape, lambda i: (0, 0)),       # 9 edge masks
            ],
            out_specs=pl.BlockSpec((BC, hw), lambda i: (i, 0)),
            scratch_shapes=[pltpu.VMEM((k_stage, hw), jnp.float32)],
        ),
        # batch blocks are independent -> "parallel": shards across v7x's 2 TCs,
        # harmless no-op on single-TensorCore v5e / v6e (grid size 1 there).
        compiler_params=pltpu.CompilerParams(dimension_semantics=("parallel",)),
    )(x2, slab, wsq, wbig, masks)

    return out.reshape(n, c, h, w)


# --------------------------- parameter setup --------------------------------
def init_params(key):
    ks = jax.random.split(key, 7)
    gamma = jax.random.normal(ks[0], (OP_C,), jnp.float32)           # GN gamma (randn)
    beta = jnp.zeros((OP_C,), jnp.float32)                           # GN beta
    ws1 = jax.random.normal(ks[1], (UP_S, UP_C), jnp.float32) * 0.3  # squeeze1 1x1
    ws2 = jax.random.normal(ks[2], (LOW_S, LOW_C), jnp.float32) * 0.3
    wg = jax.random.normal(ks[3], (OP_C, UP_S // GROUP_SIZE, GKS, GKS),
                           jnp.float32) * 0.3                        # GWC grouped weight
    bg = jax.random.normal(ks[4], (OP_C,), jnp.float32) * 0.1        # GWC bias
    wp1 = jax.random.normal(ks[5], (OP_C, UP_S), jnp.float32) * 0.3  # PWC1 1x1
    wp2 = jax.random.normal(ks[6], (OP_C - LOW_S, LOW_S), jnp.float32) * 0.3  # PWC2
    return dict(gamma=gamma, beta=beta, ws1=ws1, ws2=ws2, wg=wg, bg=bg,
                wp1=wp1, wp2=wp2)


# ------------------------- pure-JAX reference --------------------------------
def scconv_ref(x, p):
    n, c, h, w = x.shape
    hp = lax.Precision.HIGHEST
    # SRU / GroupBatchnorm2d
    xg = x.reshape(n, GROUP_NUM, -1)
    mean = xg.mean(axis=2, keepdims=True)
    ne = xg.shape[2]
    var = jnp.sum((xg - mean) ** 2, axis=2, keepdims=True) / (ne - 1)
    xn = ((xg - mean) / (jnp.sqrt(var) + EPS)).reshape(n, c, h, w)
    gn_x = xn * p["gamma"][None, :, None, None] + p["beta"][None, :, None, None]
    w_gamma = p["gamma"] / jnp.sum(p["gamma"])
    rw = jax.nn.sigmoid(gn_x * w_gamma[None, :, None, None])
    info = rw >= GATE_T
    x1 = jnp.where(info, x, 0.0)
    x2 = jnp.where(info, 0.0, x)
    hh = c // 2
    xr = jnp.concatenate([x1[:, :hh] + x2[:, hh:], x1[:, hh:] + x2[:, :hh]], axis=1)
    # CRU
    up, low = xr[:, :UP_C], xr[:, UP_C:]
    up_s = jnp.einsum("oc,nchw->nohw", p["ws1"], up, precision=hp)
    low_s = jnp.einsum("oc,nchw->nohw", p["ws2"], low, precision=hp)
    gwc = lax.conv_general_dilated(
        up_s, p["wg"], (1, 1), "SAME",
        dimension_numbers=("NCHW", "OIHW", "NCHW"),
        feature_group_count=GROUP_SIZE, precision=hp)
    gwc = gwc + p["bg"][None, :, None, None]
    y1 = gwc + jnp.einsum("oc,nchw->nohw", p["wp1"], up_s, precision=hp)
    y2 = jnp.concatenate(
        [jnp.einsum("oc,nchw->nohw", p["wp2"], low_s, precision=hp), low_s], axis=1)
    out = jnp.concatenate([y1, y2], axis=1)
    m = out.mean(axis=(2, 3), keepdims=True)
    s = jax.nn.softmax(m, axis=1)
    out = s * out
    return out[:, :OP_C] + out[:, OP_C:]


# --------------------------------- main --------------------------------------
if __name__ == "__main__":
    key = jax.random.PRNGKey(0)
    kx, kp = jax.random.split(key)
    x = jax.random.normal(kx, (N, OP_C, H, W), jnp.float32)
    params = init_params(kp)

    out = scconv_pallas(x, params)
    out = jax.block_until_ready(out)
    assert out.shape == (N, OP_C, H, W)

    ref = scconv_ref(x, params)
    diff = float(np.max(np.abs(np.asarray(out) - np.asarray(ref))))
    if not np.allclose(np.asarray(out), np.asarray(ref), atol=5e-3, rtol=5e-3):
        raise AssertionError(f"Pallas / reference mismatch, max abs diff = {diff}")

    print("KERNEL_OK")
</pallas_src>

<mosaic_0001>
module attributes {stable_mosaic.version = 11 : i64} {
  func.func @kernel(%arg0: i32, %arg1: memref<32x256xf32, #tpu.memory_space<vmem>>, %arg2: memref<32x67xf32, #tpu.memory_space<vmem>>, %arg3: memref<32x32xf32, #tpu.memory_space<vmem>>, %arg4: memref<64x80xf32, #tpu.memory_space<vmem>>, %arg5: memref<9x256xf32, #tpu.memory_space<vmem>>, %arg6: memref<32x256xf32, #tpu.memory_space<vmem>>, %arg7: memref<80x256xf32, #tpu.memory_space<vmem>>) attributes {dimension_semantics = [#tpu.dimension_semantics<parallel>], iteration_bounds = array<i64: 1>, scalar_prefetch = 0 : i64, scratch_operands = 1 : i64, tpu.core_type = #tpu.core_type<tc>, window_params = [{transform_indices = @transform_0, window_bounds = array<i64: 32, 256>}, {pipeline_mode = #tpu.pipeline_mode<synchronous>, transform_indices = @transform_1, window_bounds = array<i64: 32, 67>}, {pipeline_mode = #tpu.pipeline_mode<synchronous>, transform_indices = @transform_2, window_bounds = array<i64: 32, 32>}, {pipeline_mode = #tpu.pipeline_mode<synchronous>, transform_indices = @transform_3, window_bounds = array<i64: 64, 80>}, {pipeline_mode = #tpu.pipeline_mode<synchronous>, transform_indices = @transform_4, window_bounds = array<i64: 9, 256>}, {transform_indices = @transform_5, window_bounds = array<i64: 32, 256>}]} {
    %c0 = arith.constant 0 : index
    %c0_0 = arith.constant 0 : index
    %0 = vector.load %arg1[%c0, %c0_0] : memref<32x256xf32, #tpu.memory_space<vmem>>, vector<32x256xf32>
    %c0_1 = arith.constant 0 : index
    %c0_2 = arith.constant 0 : index
    %1 = vector.load %arg2[%c0_1, %c0_2] : memref<32x67xf32, #tpu.memory_space<vmem>>, vector<32x32xf32>
    %c0_3 = arith.constant 0 : index
    %c32 = arith.constant 32 : index
    %2 = vector.load %arg2[%c0_3, %c32] : memref<32x67xf32, #tpu.memory_space<vmem>>, vector<32x32xf32>
    %c0_4 = arith.constant 0 : index
    %c64 = arith.constant 64 : index
    %3 = vector.load %arg2[%c0_4, %c64] : memref<32x67xf32, #tpu.memory_space<vmem>>, vector<32x1xf32>
    %c0_5 = arith.constant 0 : index
    %c65 = arith.constant 65 : index
    %4 = vector.load %arg2[%c0_5, %c65] : memref<32x67xf32, #tpu.memory_space<vmem>>, vector<32x1xf32>
    %c0_6 = arith.constant 0 : index
    %c66 = arith.constant 66 : index
    %5 = vector.load %arg2[%c0_6, %c66] : memref<32x67xf32, #tpu.memory_space<vmem>>, vector<32x1xf32>
    %cst = arith.constant dense<0.000000e+00> : vector<32xf32>
    %6 = vector.multi_reduction <add>, %0, %cst [1] : vector<32x256xf32> to vector<32xf32>
    %7 = vector.shape_cast %6 : vector<32xf32> to vector<32x1xf32>
    %8 = arith.mulf %0, %0 : vector<32x256xf32>
    %cst_7 = arith.constant dense<0.000000e+00> : vector<32xf32>
    %9 = vector.multi_reduction <add>, %8, %cst_7 [1] : vector<32x256xf32> to vector<32xf32>
    %10 = vector.shape_cast %9 : vector<32xf32> to vector<32x1xf32>
    %11 = tpu.concatenate %7, %10 in 1 : vector<32x1xf32>, vector<32x1xf32> -> vector<32x2xf32>
    %cst_8 = arith.constant dense<0.000000e+00> : vector<32x2xf32>
    %12 = tpu.matmul %1, %11, %cst_8 {dimension_numbers = #tpu.dot_dimension_numbers<[1], [0], [0], [1], [0, 0, 1, 1], [], []>} : vector<32x32xf32>, vector<32x2xf32>, vector<32x2xf32> -> vector<32x2xf32>
    %13 = vector.extract_strided_slice %12 {offsets = [0, 0], sizes = [32, 1], strides = [1, 1]} : vector<32x2xf32> to vector<32x1xf32>
    %cst_9 = arith.constant 9.765625E-4 : f32
    %14 = vector.broadcast %cst_9 : f32 to vector<32x1xf32>
    %15 = arith.mulf %13, %14 : vector<32x1xf32>
    %16 = vector.extract_strided_slice %12 {offsets = [0, 1], sizes = [32, 1], strides = [1, 1]} : vector<32x2xf32> to vector<32x1xf32>
    %cst_10 = arith.constant 1.024000e+03 : f32
    %17 = vector.broadcast %cst_10 : f32 to vector<32x1xf32>
    %18 = arith.mulf %17, %15 : vector<32x1xf32>
    %19 = arith.mulf %18, %15 : vector<32x1xf32>
    %20 = arith.subf %16, %19 : vector<32x1xf32>
    %cst_11 = arith.constant 9.77517105E-4 : f32
    %21 = vector.broadcast %cst_11 : f32 to vector<32x1xf32>
    %22 = arith.mulf %20, %21 : vector<32x1xf32>
    %23 = math.sqrt %22 : vector<32x1xf32>
    %cst_12 = arith.constant 1.000000e-10 : f32
    %24 = vector.broadcast %cst_12 : f32 to vector<32x1xf32>
    %25 = arith.addf %23, %24 : vector<32x1xf32>
    %26 = arith.divf %3, %25 : vector<32x1xf32>
    %27 = vector.broadcast %15 : vector<32x1xf32> to vector<32x256xf32>
    %28 = arith.subf %0, %27 : vector<32x256xf32>
    %29 = vector.broadcast %26 : vector<32x1xf32> to vector<32x256xf32>
    %30 = arith.mulf %28, %29 : vector<32x256xf32>
    %31 = vector.broadcast %4 : vector<32x1xf32> to vector<32x256xf32>
    %32 = arith.addf %30, %31 : vector<32x256xf32>
    %cst_13 = arith.constant 0.000000e+00 : f32
    %33 = vector.broadcast %cst_13 : f32 to vector<32x256xf32>
    %34 = arith.cmpf oge, %32, %33 : vector<32x256xf32>
    %cst_14 = arith.constant 0.000000e+00 : f32
    %35 = vector.broadcast %cst_14 : f32 to vector<32x256xf32>
    %36 = arith.select %34, %0, %35 : vector<32x256xi1>, vector<32x256xf32>
    %c16 = arith.constant 16 : index
    %c0_15 = arith.constant 0 : index
    %37 = vector.load %arg3[%c16, %c0_15] : memref<32x32xf32, #tpu.memory_space<vmem>>, vector<16x32xf32>
    %cst_16 = arith.constant dense<0.000000e+00> : vector<16x256xf32>
    %38 = tpu.matmul %37, %0, %cst_16 {dimension_numbers = #tpu.dot_dimension_numbers<[1], [0], [0], [1], [0, 0, 1, 1], [], []>} : vector<16x32xf32>, vector<32x256xf32>, vector<16x256xf32> -> vector<16x256xf32>
    %c0_17 = arith.constant 0 : index
    %c0_18 = arith.constant 0 : index
    %39 = vector.load %arg3[%c0_17, %c0_18] : memref<32x32xf32, #tpu.memory_space<vmem>>, vector<16x32xf32>
    %cst_19 = arith.constant dense<0.000000e+00> : vector<16x256xf32>
    %40 = tpu.matmul %39, %36, %cst_19 {dimension_numbers = #tpu.dot_dimension_numbers<[1], [0], [0], [1], [0, 0, 1, 1], [], []>} : vector<16x32xf32>, vector<32x256xf32>, vector<16x256xf32> -> vector<16x256xf32>
    %41 = arith.addf %38, %40 : vector<16x256xf32>
    %42 = vector.extract_strided_slice %41 {offsets = [0, 0], sizes = [8, 256], strides = [1, 1]} : vector<16x256xf32> to vector<8x256xf32>
    %43 = vector.extract_strided_slice %41 {offsets = [8, 0], sizes = [8, 256], strides = [1, 1]} : vector<16x256xf32> to vector<8x256xf32>
    %c17_i32 = arith.constant 17 : i32
    %44 = tpu.dynamic_rotate %42 by %c17_i32 dim 1 : vector<8x256xf32>, i32 -> vector<8x256xf32>
    %c0_20 = arith.constant 0 : index
    %c0_21 = arith.constant 0 : index
    %45 = vector.load %arg5[%c0_20, %c0_21] : memref<9x256xf32, #tpu.memory_space<vmem>>, vector<1x256xf32>
    %46 = vector.broadcast %45 : vector<1x256xf32> to vector<8x256xf32>
    %47 = arith.mulf %44, %46 : vector<8x256xf32>
    %c0_22 = arith.constant 0 : index
    %c0_23 = arith.constant 0 : index
    %48 = vector.load %arg7[%c0_22, %c0_23] : memref<80x256xf32, #tpu.memory_space<vmem>>, vector<8x256xf32>
    tpu.vector_store %arg7[%c0_22, %c0_23], %47 {strides = array<i32>} : memref<80x256xf32, #tpu.memory_space<vmem>>, vector<8x256xf32>,
    %c16_i32 = arith.constant 16 : i32
    %49 = tpu.dynamic_rotate %42 by %c16_i32 dim 1 : vector<8x256xf32>, i32 -> vector<8x256xf32>
    %c1 = arith.constant 1 : index
    %c0_24 = arith.constant 0 : index
    %50 = vector.load %arg5[%c1, %c0_24] : memref<9x256xf32, #tpu.memory_space<vmem>>, vector<1x256xf32>
    %51 = vector.broadcast %50 : vector<1x256xf32> to vector<8x256xf32>
    %52 = arith.mulf %49, %51 : vector<8x256xf32>
    %c8 = arith.constant 8 : index
    %c0_25 = arith.constant 0 : index
    %53 = vector.load %arg7[%c8, %c0_25] : memref<80x256xf32, #tpu.memory_space<vmem>>, vector<8x256xf32>
    tpu.vector_store %arg7[%c8, %c0_25], %52 {strides = array<i32>} : memref<80x256xf32, #tpu.memory_space<vmem>>, vector<8x256xf32>,
    %c15_i32 = arith.constant 15 : i32
    %54 = tpu.dynamic_rotate %42 by %c15_i32 dim 1 : vector<8x256xf32>, i32 -> vector<8x256xf32>
    %c2 = arith.constant 2 : index
    %c0_26 = arith.constant 0 : index
    %55 = vector.load %arg5[%c2, %c0_26] : memref<9x256xf32, #tpu.memory_space<vmem>>, vector<1x256xf32>
    %56 = vector.broadcast %55 : vector<1x256xf32> to vector<8x256xf32>
    %57 = arith.mulf %54, %56 : vector<8x256xf32>
    %c16_27 = arith.constant 16 : index
    %c0_28 = arith.constant 0 : index
    %58 = vector.load %arg7[%c16_27, %c0_28] : memref<80x256xf32, #tpu.memory_space<vmem>>, vector<8x256xf32>
    tpu.vector_store %arg7[%c16_27, %c0_28], %57 {strides = array<i32>} : memref<80x256xf32, #tpu.memory_space<vmem>>, vector<8x256xf32>,
    %c1_i32 = arith.constant 1 : i32
    %59 = tpu.dynamic_rotate %42 by %c1_i32 dim 1 : vector<8x256xf32>, i32 -> vector<8x256xf32>
    %c3 = arith.constant 3 : index
    %c0_29 = arith.constant 0 : index
    %60 = vector.load %arg5[%c3, %c0_29] : memref<9x256xf32, #tpu.memory_space<vmem>>, vector<1x256xf32>
    %61 = vector.broadcast %60 : vector<1x256xf32> to vector<8x256xf32>
    %62 = arith.mulf %59, %61 : vector<8x256xf32>
    %c24 = arith.constant 24 : index
    %c0_30 = arith.constant 0 : index
    %63 = vector.load %arg7[%c24, %c0_30] : memref<80x256xf32, #tpu.memory_space<vmem>>, vector<8x256xf32>
    tpu.vector_store %arg7[%c24, %c0_30], %62 {strides = array<i32>} : memref<80x256xf32, #tpu.memory_space<vmem>>, vector<8x256xf32>,
    %c32_31 = arith.constant 32 : index
    %c0_32 = arith.constant 0 : index
    %64 = vector.load %arg7[%c32_31, %c0_32] : memref<80x256xf32, #tpu.memory_space<vmem>>, vector<8x256xf32>
    tpu.vector_store %arg7[%c32_31, %c0_32], %42 {strides = array<i32>} : memref<80x256xf32, #tpu.memory_space<vmem>>, vector<8x256xf32>,
    %c255_i32 = arith.constant 255 : i32
    %65 = tpu.dynamic_rotate %42 by %c255_i32 dim 1 : vector<8x256xf32>, i32 -> vector<8x256xf32>
    %c5 = arith.constant 5 : index
    %c0_33 = arith.constant 0 : index
    %66 = vector.load %arg5[%c5, %c0_33] : memref<9x256xf32, #tpu.memory_space<vmem>>, vector<1x256xf32>
    %67 = vector.broadcast %66 : vector<1x256xf32> to vector<8x256xf32>
    %68 = arith.mulf %65, %67 : vector<8x256xf32>
    %c40 = arith.constant 40 : index
    %c0_34 = arith.constant 0 : index
    %69 = vector.load %arg7[%c40, %c0_34] : memref<80x256xf32, #tpu.memory_space<vmem>>, vector<8x256xf32>
    tpu.vector_store %arg7[%c40, %c0_34], %68 {strides = array<i32>} : memref<80x256xf32, #tpu.memory_space<vmem>>, vector<8x256xf32>,
    %c241_i32 = arith.constant 241 : i32
    %70 = tpu.dynamic_rotate %42 by %c241_i32 dim 1 : vector<8x256xf32>, i32 -> vector<8x256xf32>
    %c6 = arith.constant 6 : index
    %c0_35 = arith.constant 0 : index
    %71 = vector.load %arg5[%c6, %c0_35] : memref<9x256xf32, #tpu.memory_space<vmem>>, vector<1x256xf32>
    %72 = vector.broadcast %71 : vector<1x256xf32> to vector<8x256xf32>
    %73 = arith.mulf %70, %72 : vector<8x256xf32>
    %c48 = arith.constant 48 : index
    %c0_36 = arith.constant 0 : index
    %74 = vector.load %arg7[%c48, %c0_36] : memref<80x256xf32, #tpu.memory_space<vmem>>, vector<8x256xf32>
    tpu.vector_store %arg7[%c48, %c0_36], %73 {strides = array<i32>} : memref<80x256xf32, #tpu.memory_space<vmem>>, vector<8x256xf32>,
    %c240_i32 = arith.constant 240 : i32
    %75 = tpu.dynamic_rotate %42 by %c240_i32 dim 1 : vector<8x256xf32>, i32 -> vector<8x256xf32>
    %c7 = arith.constant 7 : index
    %c0_37 = arith.constant 0 : index
    %76 = vector.load %arg5[%c7, %c0_37] : memref<9x256xf32, #tpu.memory_space<vmem>>, vector<1x256xf32>
    %77 = vector.broadcast %76 : vector<1x256xf32> to vector<8x256xf32>
    %78 = arith.mulf %75, %77 : vector<8x256xf32>
    %c56 = arith.constant 56 : index
    %c0_38 = arith.constant 0 : index
    %79 = vector.load %arg7[%c56, %c0_38] : memref<80x256xf32, #tpu.memory_space<vmem>>, vector<8x256xf32>
    tpu.vector_store %arg7[%c56, %c0_38], %78 {strides = array<i32>} : memref<80x256xf32, #tpu.memory_space<vmem>>, vector<8x256xf32>,
    %c239_i32 = arith.constant 239 : i32
    %80 = tpu.dynamic_rotate %42 by %c239_i32 dim 1 : vector<8x256xf32>, i32 -> vector<8x256xf32>
    %c8_39 = arith.constant 8 : index
    %c0_40 = arith.constant 0 : index
    %81 = vector.load %arg5[%c8_39, %c0_40] : memref<9x256xf32, #tpu.memory_space<vmem>>, vector<1x256xf32>
    %82 = vector.broadcast %81 : vector<1x256xf32> to vector<8x256xf32>
    %83 = arith.mulf %80, %82 : vector<8x256xf32>
    %c64_41 = arith.constant 64 : index
    %c0_42 = arith.constant 0 : index
    %84 = vector.load %arg7[%c64_41, %c0_42] : memref<80x256xf32, #tpu.memory_space<vmem>>, vector<8x256xf32>
    tpu.vector_store %arg7[%c64_41, %c0_42], %83 {strides = array<i32>} : memref<80x256xf32, #tpu.memory_space<vmem>>, vector<8x256xf32>,
    %c72 = arith.constant 72 : index
    %c0_43 = arith.constant 0 : index
    %85 = vector.load %arg7[%c72, %c0_43] : memref<80x256xf32, #tpu.memory_space<vmem>>, vector<8x256xf32>
    tpu.vector_store %arg7[%c72, %c0_43], %43 {strides = array<i32>} : memref<80x256xf32, #tpu.memory_space<vmem>>, vector<8x256xf32>,
    %c0_44 = arith.constant 0 : index
    %c0_45 = arith.constant 0 : index
    %86 = vector.load %arg4[%c0_44, %c0_45] : memref<64x80xf32, #tpu.memory_space<vmem>>, vector<64x80xf32>
    %c0_46 = arith.constant 0 : index
    %c0_47 = arith.constant 0 : index
    %87 = vector.load %arg7[%c0_46, %c0_47] : memref<80x256xf32, #tpu.memory_space<vmem>>, vector<80x256xf32>
    %cst_48 = arith.constant dense<0.000000e+00> : vector<64x256xf32>
    %88 = tpu.matmul %86, %87, %cst_48 {dimension_numbers = #tpu.dot_dimension_numbers<[1], [0], [0], [1], [0, 0, 1, 1], [], []>} : vector<64x80xf32>, vector<80x256xf32>, vector<64x256xf32> -> vector<64x256xf32>
    %89 = vector.extract_strided_slice %88 {offsets = [0, 0], sizes = [32, 256], strides = [1, 1]} : vector<64x256xf32> to vector<32x256xf32>
    %90 = vector.broadcast %5 : vector<32x1xf32> to vector<32x256xf32>
    %91 = arith.addf %89, %90 : vector<32x256xf32>
    %92 = vector.extract_strided_slice %88 {offsets = [32, 0], sizes = [32, 256], strides = [1, 1]} : vector<64x256xf32> to vector<32x256xf32>
    %cst_49 = arith.constant dense<0.000000e+00> : vector<32xf32>
    %93 = vector.multi_reduction <add>, %91, %cst_49 [1] : vector<32x256xf32> to vector<32xf32>
    %94 = vector.shape_cast %93 : vector<32xf32> to vector<32x1xf32>
    %cst_50 = arith.constant 2.560000e+02 : f32
    %95 = vector.broadcast %cst_50 : f32 to vector<32x1xf32>
    %96 = arith.divf %94, %95 : vector<32x1xf32>
    %cst_51 = arith.constant dense<0.000000e+00> : vector<32xf32>
    %97 = vector.multi_reduction <add>, %92, %cst_51 [1] : vector<32x256xf32> to vector<32xf32>
    %98 = vector.shape_cast %97 : vector<32xf32> to vector<32x1xf32>
    %cst_52 = arith.constant 2.560000e+02 : f32
    %99 = vector.broadcast %cst_52 : f32 to vector<32x1xf32>
    %100 = arith.divf %98, %99 : vector<32x1xf32>
    %101 = vector.shape_cast %96 : vector<32x1xf32> to vector<1x32x1xf32>
    %cst_53 = arith.constant dense<0xFF800000> : vector<1xf32>
    %102 = vector.multi_reduction <maximumf>, %101, %cst_53 [1, 2] : vector<1x32x1xf32> to vector<1xf32>
    %103 = vector.shape_cast %102 : vector<1xf32> to vector<1x1x1xf32>
    %104 = vector.extract %103[0, 0, 0] : f32 from vector<1x1x1xf32>
    %105 = vector.shape_cast %100 : vector<32x1xf32> to vector<1x32x1xf32>
    %cst_54 = arith.constant dense<0xFF800000> : vector<1xf32>
    %106 = vector.multi_reduction <maximumf>, %105, %cst_54 [1, 2] : vector<1x32x1xf32> to vector<1xf32>
    %107 = vector.shape_cast %106 : vector<1xf32> to vector<1x1x1xf32>
    %108 = vector.extract %107[0, 0, 0] : f32 from vector<1x1x1xf32>
    %109 = arith.maximumf %104, %108 : f32
    %110 = vector.broadcast %109 : f32 to vector<32x1xf32>
    %111 = arith.subf %96, %110 : vector<32x1xf32>
    %112 = math.exp %111 : vector<32x1xf32>
    %113 = vector.broadcast %109 : f32 to vector<32x1xf32>
    %114 = arith.subf %100, %113 : vector<32x1xf32>
    %115 = math.exp %114 : vector<32x1xf32>
    %116 = arith.addf %112, %115 : vector<32x1xf32>
    %cst_55 = arith.constant dense<0.000000e+00> : vector<32x1xf32>
    %117 = tpu.matmul %2, %116, %cst_55 {dimension_numbers = #tpu.dot_dimension_numbers<[1], [0], [0], [1], [0, 0, 1, 1], [], []>} : vector<32x32xf32>, vector<32x1xf32>, vector<32x1xf32> -> vector<32x1xf32>
    %cst_56 = arith.constant 1.000000e+00 : f32
    %118 = vector.broadcast %cst_56 : f32 to vector<32x1xf32>
    %119 = arith.divf %118, %117 : vector<32x1xf32>
    %120 = arith.mulf %112, %119 : vector<32x1xf32>
    %121 = vector.broadcast %120 : vector<32x1xf32> to vector<32x256xf32>
    %122 = arith.mulf %121, %91 : vector<32x256xf32>
    %123 = arith.mulf %115, %119 : vector<32x1xf32>
    %124 = vector.broadcast %123 : vector<32x1xf32> to vector<32x256xf32>
    %125 = arith.mulf %124, %92 : vector<32x256xf32>
    %126 = arith.addf %122, %125 : vector<32x256xf32>
    %c0_57 = arith.constant 0 : index
    %c0_58 = arith.constant 0 : index
    %127 = vector.load %arg6[%c0_57, %c0_58] : memref<32x256xf32, #tpu.memory_space<vmem>>, vector<32x256xf32>
    tpu.vector_store %arg6[%c0_57, %c0_58], %126 {strides = array<i32>} : memref<32x256xf32, #tpu.memory_space<vmem>>, vector<32x256xf32>,
    return
  }
  func.func @transform_0(%arg0: i32) -> (i32, i32) {
    %c0_i32 = arith.constant 0 : i32
    %c0_i32_0 = arith.constant 0 : i32
    return %arg0, %c0_i32 : i32, i32
  }
  func.func @transform_1(%arg0: i32) -> (i32, i32) {
    %c0_i32 = arith.constant 0 : i32
    %c0_i32_0 = arith.constant 0 : i32
    %c0_i32_1 = arith.constant 0 : i32
    return %c0_i32, %c0_i32_0 : i32, i32
  }
  func.func @transform_2(%arg0: i32) -> (i32, i32) {
    %c0_i32 = arith.constant 0 : i32
    %c0_i32_0 = arith.constant 0 : i32
    %c0_i32_1 = arith.constant 0 : i32
    return %c0_i32, %c0_i32_0 : i32, i32
  }
  func.func @transform_3(%arg0: i32) -> (i32, i32) {
    %c0_i32 = arith.constant 0 : i32
    %c0_i32_0 = arith.constant 0 : i32
    %c0_i32_1 = arith.constant 0 : i32
    return %c0_i32, %c0_i32_0 : i32, i32
  }
  func.func @transform_4(%arg0: i32) -> (i32, i32) {
    %c0_i32 = arith.constant 0 : i32
    %c0_i32_0 = arith.constant 0 : i32
    %c0_i32_1 = arith.constant 0 : i32
    return %c0_i32, %c0_i32_0 : i32, i32
  }
  func.func @transform_5(%arg0: i32) -> (i32, i32) {
    %c0_i32 = arith.constant 0 : i32
    %c0_i32_0 = arith.constant 0 : i32
    return %arg0, %c0_i32 : i32, i32
  }
}

</mosaic_0001>

<llo_original>
// kernel: tpu_custom_call.1
$region0: #{tpu_custom_call.1}
  #allocation0 [shape = 'u32[]', space=smem, size = 0x4, offset = 0x4, fixed_abs, tag = 'smem constant byte address 0x4 - core index']
  #allocation1 [shape = 'u32[144,128]{1,0:T(1,128)}', space=vmem, size = 0x12000, scoped, tag = 'internal scratch']
  #allocation2 [shape = 'f32[80,256]{1,0:T(8,128)}', space=vmem, size = 0x14000, scoped, tag = 'scratch operand']
  %s0 = inlined_call_operand.hbm [shape: f32[32,256], index: 0, kind: input, shape index: {}]
  %s1 = inlined_call_operand.hbm [shape: f32[32,67], index: 1, kind: input, shape index: {}]
  %s2 = inlined_call_operand.hbm [shape: f32[32,32], index: 2, kind: input, shape index: {}]
  %s3 = inlined_call_operand.hbm [shape: f32[64,80], index: 3, kind: input, shape index: {}]
  %s4 = inlined_call_operand.hbm [shape: f32[9,256], index: 4, kind: input, shape index: {}]
  %s5 = inlined_call_operand.hbm [shape: f32[32,256], index: 5, kind: output, shape index: {}]
  %s6 = sld [smem:[#allocation0]]
  $region50: #{tpu_custom_call.1} parent=0
    _
  %s8 = ssub.s32 1, %s6
  %s9 = scalar_select 0, %s8, %s6
  $region1: #{tpu_custom_call.1} parent=0
    #allocation3 [shape = 'u8[32768]{0}', space=vmem, size = 0x8000, scoped, tag = 'input window, operand 0, single buffered']
    #allocation4 [shape = 's32[1]{0}', space=sflag, size = 0x4, scoped, tag = 'scoped memory for tpu_custom_call.1']
    #allocation5 [shape = 's32[1]{0}', space=sflag, size = 0x4, scoped, tag = 'scoped memory for tpu_custom_call.1']
    #allocation6 [shape = 'u8[16384]{0}', space=vmem, size = 0x4000, scoped, tag = 'input window, operand 1, single buffered']
    #allocation7 [shape = 's32[1]{0}', space=sflag, size = 0x4, scoped, tag = 'scoped memory for tpu_custom_call.1']
    #allocation8 [shape = 'u8[16384]{0}', space=vmem, size = 0x4000, scoped, tag = 'input window, operand 2, single buffered']
    #allocation9 [shape = 'u8[32768]{0}', space=vmem, size = 0x8000, scoped, tag = 'input window, operand 3, single buffered']
    #allocation10 [shape = 's32[1]{0}', space=sflag, size = 0x4, scoped, tag = 'scoped memory for tpu_custom_call.1']
    #allocation11 [shape = 'u8[16384]{0}', space=vmem, size = 0x4000, scoped, tag = 'input window, operand 4, single buffered']
    #allocation12 [shape = 'u8[32768]{0}', space=vmem, size = 0x8000, scoped, tag = 'output window, operand 0, single buffered']
    %10 = vsyncpa [#allocation4], 0
    %11 = vsyncpa [#allocation7], 0
    %12 = vsyncpa [#allocation10], 0
    %13 = vsyncpa [#allocation5], 0
    // Predicated region
    $region2: #{tpu_custom_call.1} parent=1 // pred_check
      _
    $region3: #{tpu_custom_call.1} parent=1 // pred_check_branch
      %15 = sbr.rel (0) target = $region5
    $region4: #{tpu_custom_call.1} parent=1 // pred_region
      %s17 = ssub.s32 1024, 1024
      %18 = vsyncadd [#allocation4], %s17
      %s19 = sshll.u32 [#allocation3], 4
      %s20 = int_to_ptr.vmem [resolvable:$true] %s19
      %25 = dma.hbm_to_vmem [thread:$0]  %s0, 1024, %s20, [#allocation4], 256, 256, 16
    $region5: #{tpu_custom_call.1} parent=1 // pred_fallthru
      _
    // Predicated region
    $region6: #{tpu_custom_call.1} parent=1 // pred_check
      _
    $region7: #{tpu_custom_call.1} parent=1 // pred_check_branch
      %27 = sbr.rel (0) target = $region9
    $region8: #{tpu_custom_call.1} parent=1 // pred_region
      %s29 = ssub.s32 512, 512
      %30 = vsyncadd [#allocation7], %s29
      %s31 = sshll.u32 [#allocation6], 4
      %s32 = int_to_ptr.vmem [resolvable:$true] %s31
      %37 = dma.hbm_to_vmem [thread:$0]  %s1, 512, %s32, [#allocation7], 128, 128, 8
    $region9: #{tpu_custom_call.1} parent=1 // pred_fallthru
      _
    // Predicated region
    $region10: #{tpu_custom_call.1} parent=1 // pred_check
      _
    $region11: #{tpu_custom_call.1} parent=1 // pred_check_branch
      %39 = sbr.rel (0) target = $region13
    $region12: #{tpu_custom_call.1} parent=1 // pred_region
      %s41 = ssub.s32 512, 512
      %42 = vsyncadd [#allocation7], %s41
      %s43 = sshll.u32 [#allocation8], 4
      %s44 = int_to_ptr.vmem [resolvable:$true] %s43
      %49 = dma.hbm_to_vmem [thread:$0]  %s2, 512, %s44, [#allocation7], 128, 128, 8
    $region13: #{tpu_custom_call.1} parent=1 // pred_fallthru
      _
    // Predicated region
    $region14: #{tpu_custom_call.1} parent=1 // pred_check
      _
    $region15: #{tpu_custom_call.1} parent=1 // pred_check_branch
      %51 = sbr.rel (0) target = $region17
    $region16: #{tpu_custom_call.1} parent=1 // pred_region
      %s53 = ssub.s32 1024, 1024
      %54 = vsyncadd [#allocation10], %s53
      %s55 = sshll.u32 [#allocation9], 4
      %s56 = int_to_ptr.vmem [resolvable:$true] %s55
      %61 = dma.hbm_to_vmem [thread:$0]  %s3, 1024, %s56, [#allocation10], 128, 128, 8
    $region17: #{tpu_custom_call.1} parent=1 // pred_fallthru
      _
    // Predicated region
    $region18: #{tpu_custom_call.1} parent=1 // pred_check
      _
    $region19: #{tpu_custom_call.1} parent=1 // pred_check_branch
      %63 = sbr.rel (0) target = $region21
    $region20: #{tpu_custom_call.1} parent=1 // pred_region
      %s65 = ssub.s32 512, 512
      %66 = vsyncadd [#allocation10], %s65
      %s67 = sshll.u32 [#allocation11], 4
      %s68 = int_to_ptr.vmem [resolvable:$true] %s67
      %73 = dma.hbm_to_vmem [thread:$0]  %s4, 512, %s68, [#allocation10], 256, 256, 16
    $region21: #{tpu_custom_call.1} parent=1 // pred_fallthru
      _
    // Predicated region
    $region22: #{tpu_custom_call.1} parent=1 // pred_check
      _
    $region23: #{tpu_custom_call.1} parent=1 // pred_check_branch
      %75 = sbr.rel (0) target = $region25
    $region24: #{tpu_custom_call.1} parent=1 // pred_region
      %76 = dma.done [#allocation4], 1024
    $region25: #{tpu_custom_call.1} parent=1 // pred_fallthru
      _
    // Predicated region
    $region26: #{tpu_custom_call.1} parent=1 // pred_check
      _
    $region27: #{tpu_custom_call.1} parent=1 // pred_check_branch
      %78 = sbr.rel (0) target = $region29
    $region28: #{tpu_custom_call.1} parent=1 // pred_region
      %79 = dma.done [#allocation7], 512
    $region29: #{tpu_custom_call.1} parent=1 // pred_fallthru
      _
    // Predicated region
    $region30: #{tpu_custom_call.1} parent=1 // pred_check
      _
    $region31: #{tpu_custom_call.1} parent=1 // pred_check_branch
      %81 = sbr.rel (0) target = $region33
    $region32: #{tpu_custom_call.1} parent=1 // pred_region
      %82 = dma.done [#allocation7], 512
    $region33: #{tpu_custom_call.1} parent=1 // pred_fallthru
      _
    // Predicated region
    $region34: #{tpu_custom_call.1} parent=1 // pred_check
      _
    $region35: #{tpu_custom_call.1} parent=1 // pred_check_branch
      %84 = sbr.rel (0) target = $region37
    $region36: #{tpu_custom_call.1} parent=1 // pred_region
      %85 = dma.done [#allocation10], 1024
    $region37: #{tpu_custom_call.1} parent=1 // pred_fallthru
      _
    // Predicated region
    $region38: #{tpu_custom_call.1} parent=1 // pred_check
      _
    $region39: #{tpu_custom_call.1} parent=1 // pred_check_branch
      %87 = sbr.rel (0) target = $region41
    $region40: #{tpu_custom_call.1} parent=1 // pred_region
      %88 = dma.done [#allocation10], 512
    $region41: #{tpu_custom_call.1} parent=1 // pred_fallthru
      _
    %v89 = vld [vmem:[#allocation3] sm:$0xff]
    %v90 = vld [vmem:[#allocation3 + $0x8] sm:$0xff]
    %v91 = vld [vmem:[#allocation3 + $0x10] sm:$0xff]
    %v92 = vld [vmem:[#allocation3 + $0x18] sm:$0xff]
    %v93 = vld [vmem:[#allocation3 + $0x20] sm:$0xff]
    %v94 = vld [vmem:[#allocation3 + $0x28] sm:$0xff]
    %v95 = vld [vmem:[#allocation3 + $0x30] sm:$0xff]
    %v96 = vld [vmem:[#allocation3 + $0x38] sm:$0xff]
    %v97 = vld [vmem:[#allocation6] sm:$0xff]
    %v98 = vld [vmem:[#allocation6 + $0x8] sm:$0xff]
    %v99 = vld [vmem:[#allocation6 + $0x10] sm:$0xff]
    %v100 = vld [vmem:[#allocation6 + $0x18] sm:$0xff]
    %v101 = vadd.f32 %v89, %v90
    %102 = vadd.xlane.f32.xlu0 %v101
    %v103 = vpop.xlane.xlu0 %102
    %v104 = vadd.f32 %v91, %v92
    %105 = vadd.xlane.f32.xlu0 %v104
    %v106 = vpop.xlane.xlu0 %105
    %v107 = vadd.f32 %v93, %v94
    %108 = vadd.xlane.f32.xlu0 %v107
    %v109 = vpop.xlane.xlu0 %108
    %v110 = vadd.f32 %v95, %v96
    %111 = vadd.xlane.f32.xlu0 %v110
    %v112 = vpop.xlane.xlu0 %111
    %v113 = vmul.f32 %v89, %v89
    %v114 = vmul.f32 %v90, %v90
    %v115 = vmul.f32 %v91, %v91
    %v116 = vmul.f32 %v92, %v92
    %v117 = vmul.f32 %v93, %v93
    %v118 = vmul.f32 %v94, %v94
    %v119 = vmul.f32 %v95, %v95
    %v120 = vmul.f32 %v96, %v96
    %v121 = vadd.f32 %v113, %v114
    %122 = vadd.xlane.f32.xlu0 %v121
    %v123 = vpop.xlane.xlu0 %122
    %v124 = vadd.f32 %v115, %v116
    %125 = vadd.xlane.f32.xlu0 %v124
    %v126 = vpop.xlane.xlu0 %125
    %v127 = vadd.f32 %v117, %v118
    %128 = vadd.xlane.f32.xlu0 %v127
    %v129 = vpop.xlane.xlu0 %128
    %v130 = vadd.f32 %v119, %v120
    %131 = vadd.xlane.f32.xlu0 %v130
    %v132 = vpop.xlane.xlu0 %131
    %vm133 = vcmask 7168
    %v134 = vsel %vm133, %v103, %v123
    %v135 = vsel %vm133, %v106, %v126
    %v136 = vsel %vm133, %v109, %v129
    %v137 = vsel %vm133, %v112, %v132
    %vm138 = vcmask 261120
    %v140 = vsel %vm138, %v97, 0
    %v143 = vsel %vm138, %v98, 0
    %v146 = vsel %vm138, %v99, 0
    %v149 = vsel %vm138, %v100, 0
    %151 = vmatprep.subr.mxu0 0.0
    %152 = vmatpush1.msra.mxu0 0.0
    %153 = vmatprep.subr.mxu0 0.0
    %154 = vmatpush1.msra.mxu0 0.0
    %155 = vmatprep.subr.mxu0 0.0
    %156 = vmatpush1.msra.mxu0 0.0
    %157 = vmatprep.subr.mxu0 0.0
    %158 = vmatpush1.msra.mxu0 0.0
    %159 = vmatprep.subr.mxu0 0.0
    %160 = vmatpush1.msra.mxu0 0.0
    %161 = vmatprep.subr.mxu0 0.0
    %162 = vmatpush1.msra.mxu0 0.0
    %163 = vmatprep.subr.mxu0 0.0
    %164 = vmatpush1.msra.mxu0 0.0
    %165 = vmatprep.subr.mxu0 0.0
    %166 = vmatpush1.msra.mxu0 0.0
    %167 = vmatprep.subr.mxu0 0.0
    %168 = vmatpush1.msra.mxu0 0.0
    %169 = vmatprep.subr.mxu0 0.0
    %170 = vmatpush1.msra.mxu0 0.0
    %171 = vmatprep.subr.mxu0 0.0
    %172 = vmatpush1.msra.mxu0 0.0
    %173 = vmatprep.subr.mxu0 0.0
    %174 = vmatpush1.msra.mxu0 0.0
    %175 = vmatprep.subr.mxu0 0.0
    %176 = vmatpush1.msra.mxu0 %v137
    %177 = vmatprep.subr.mxu0 0.0
    %178 = vmatpush1.msra.mxu0 %v136
    %179 = vmatprep.subr.mxu0 0.0
    %180 = vmatpush1.msra.mxu0 %v135
    %181 = vmatprep.subr.mxu0 0.0
    %182 = vmatpush1.msra.mxu0 %v134
    %183 = vmatprep.subr.mxu0 0.0
    %184 = vmatpush2.msra.mxu0 0.0
    %185 = vmatprep.subr.mxu0 0.0
    %186 = vmatpush2.msra.mxu0 0.0
    %187 = vmatprep.subr.mxu0 0.0
    %188 = vmatpush2.msra.mxu0 0.0
    %189 = vmatprep.subr.mxu0 0.0
    %190 = vmatpush2.msra.mxu0 0.0
    %191 = vmatprep.subr.mxu0 0.0
    %192 = vmatpush2.msra.mxu0 0.0
    %193 = vmatprep.subr.mxu0 0.0
    %194 = vmatpush2.msra.mxu0 0.0
    %195 = vmatprep.subr.mxu0 0.0
    %196 = vmatpush2.msra.mxu0 0.0
    %197 = vmatprep.subr.mxu0 0.0
    %198 = vmatpush2.msra.mxu0 0.0
    %199 = vmatprep.subr.mxu0 0.0
    %200 = vmatpush2.msra.mxu0 0.0
    %201 = vmatprep.subr.mxu0 0.0
    %202 = vmatpush2.msra.mxu0 0.0
    %203 = vmatprep.subr.mxu0 0.0
    %204 = vmatpush2.msra.mxu0 0.0
    %205 = vmatprep.subr.mxu0 0.0
    %206 = vmatpush2.msra.mxu0 0.0
    %207 = vmatprep.subr.mxu0 0.0
    %208 = vmatpush2.msra.mxu0 0.0
    %209 = vmatprep.subr.mxu0 0.0
    %210 = vmatpush2.msra.mxu0 0.0
    %211 = vmatprep.subr.mxu0 0.0
    %212 = vmatpush2.msra.mxu0 0.0
    %213 = vmatprep.subr.mxu0 0.0
    %214 = vmatpush2.msra.mxu0 0.0
    %215 = vmatprep.mubr.f32.mxu0 0.0
    %216 = vmatmul.mubr.f32.gmra.mxu0 %v140
    %v217 = vpop.f32.mrf.mxu0
    %v218 = vadd.f32 0.0, %v217
    %v219 = vpop.f32.mrf.mxu0
    %220 = vmatprep.mubr.f32.mxu0 0.0
    %221 = vmatmul.mubr.f32.gmra.mxu0 %v143
    %v222 = vpop.f32.mrf.mxu0
    %v223 = vadd.f32 0.0, %v222
    %v224 = vpop.f32.mrf.mxu0
    %225 = vmatprep.mubr.f32.mxu0 0.0
    %226 = vmatmul.mubr.f32.gmra.mxu0 %v146
    %v227 = vpop.f32.mrf.mxu0
    %v228 = vadd.f32 0.0, %v227
    %v229 = vpop.f32.mrf.mxu0
    %230 = vmatprep.mubr.f32.mxu0 0.0
    %231 = vmatmul.mubr.f32.gmra.mxu0 %v149
    %v232 = vpop.f32.mrf.mxu0
    %v233 = vadd.f32 0.0, %v232
    %v234 = vpop.f32.mrf.mxu0
    %235 = vdwg.mxu0
    %v236 = vmul.f32 %v218, 0.0009765625
    %v237 = vmul.f32 %v223, 0.0009765625
    %v238 = vmul.f32 %v228, 0.0009765625
    %v239 = vmul.f32 %v233, 0.0009765625
    %v240 = vmul.f32 %v236, 1024.0
    %v241 = vmul.f32 %v237, 1024.0
    %v242 = vmul.f32 %v238, 1024.0
    %v243 = vmul.f32 %v239, 1024.0
    %v244 = vmul.f32 %v240, %v236
    %v245 = vmul.f32 %v241, %v237
    %v246 = vmul.f32 %v242, %v238
    %v247 = vmul.f32 %v243, %v239
    %252 = vrot.lane.b32.xlu0 %v244, 1
    %v253 = vpop.permute.xlu0 %252
    %254 = vrot.lane.b32.xlu0 %v245, 1
    %v255 = vpop.permute.xlu0 %254
    %256 = vrot.lane.b32.xlu0 %v246, 1
    %v257 = vpop.permute.xlu0 %256
    %258 = vrot.lane.b32.xlu0 %v247, 1
    %v259 = vpop.permute.xlu0 %258
    %v264 = vsub.f32 %v218, %v253
    %v265 = vsub.f32 %v223, %v255
    %v266 = vsub.f32 %v228, %v257
    %v267 = vsub.f32 %v233, %v259
    %v268 = vmul.f32 %v264, 0.0009775171
    %v269 = vmul.f32 %v265, 0.0009775171
    %v270 = vmul.f32 %v266, 0.0009775171
    %v271 = vmul.f32 %v267, 0.0009775171
    %v272 = vrsqrt.pop %v268
    %v273 = vmul.f32 %v268, %v272
    %vm274 = vcmp.eq.f32.partialorder %v268, inf
    %v275 = vsel %vm274, %v268, %v273
    %vm276 = vcmp.eq.f32.partialorder %v268, 0.0
    %v277 = vand.u32 %v268, 2147483648
    %v278 = vsel %vm276, %v277, %v275
    %v279 = vrsqrt.pop %v269
    %v280 = vmul.f32 %v269, %v279
    %vm281 = vcmp.eq.f32.partialorder %v269, inf
    %v282 = vsel %vm281, %v269, %v280
    %vm283 = vcmp.eq.f32.partialorder %v269, 0.0
    %v284 = vand.u32 %v269, 2147483648
    %v285 = vsel %vm283, %v284, %v282
    %v286 = vrsqrt.pop %v270
    %v287 = vmul.f32 %v270, %v286
    %vm288 = vcmp.eq.f32.partialorder %v270, inf
    %v289 = vsel %vm288, %v270, %v287
    %vm290 = vcmp.eq.f32.partialorder %v270, 0.0
    %v291 = vand.u32 %v270, 2147483648
    %v292 = vsel %vm290, %v291, %v289
    %v293 = vrsqrt.pop %v271
    %v294 = vmul.f32 %v271, %v293
    %vm295 = vcmp.eq.f32.partialorder %v271, inf
    %v296 = vsel %vm295, %v271, %v294
    %vm297 = vcmp.eq.f32.partialorder %v271, 0.0
    %v298 = vand.u32 %v271, 2147483648
    %v299 = vsel %vm297, %v298, %v296
    %v300 = vadd.f32 %v278, 1e-10
    %v301 = vadd.f32 %v285, 1e-10
    %v302 = vadd.f32 %v292, 1e-10
    %v303 = vadd.f32 %v299, 1e-10
    %308 = vrot.lane.b32.xlu0 %v300, 63
    %v309 = vpop.permute.xlu0 %308
    %310 = vrot.lane.b32.xlu0 %v301, 63
    %v311 = vpop.permute.xlu0 %310
    %312 = vrot.lane.b32.xlu0 %v302, 63
    %v313 = vpop.permute.xlu0 %312
    %314 = vrot.lane.b32.xlu0 %v303, 63
    %v315 = vpop.permute.xlu0 %314
    %v320 = vrcp.pop %v309
    %v321 = vmul.f32 %v97, %v320
    %v322 = vrcp.pop %v311
    %v323 = vmul.f32 %v98, %v322
    %v324 = vrcp.pop %v313
    %v325 = vmul.f32 %v99, %v324
    %v326 = vrcp.pop %v315
    %v327 = vmul.f32 %v100, %v326
    %329 = vset.pattern.permute.xlu0 0
    %330 = vperm.xlu0 %329, %v236
    %v331 = vpop.permute.xlu0 %330
    %334 = vset.pattern.permute.xlu0 0
    %335 = vperm.xlu0 %334, %v237
    %v336 = vpop.permute.xlu0 %335
    %339 = vset.pattern.permute.xlu0 0
    %340 = vperm.xlu0 %339, %v238
    %v341 = vpop.permute.xlu0 %340
    %344 = vset.pattern.permute.xlu0 0
    %345 = vperm.xlu0 %344, %v239
    %v346 = vpop.permute.xlu0 %345
    %v348 = vsub.f32 %v89, %v331
    %v349 = vsub.f32 %v90, %v331
    %v350 = vsub.f32 %v91, %v336
    %v351 = vsub.f32 %v92, %v336
    %v352 = vsub.f32 %v93, %v341
    %v353 = vsub.f32 %v94, %v341
    %v354 = vsub.f32 %v95, %v346
    %v355 = vsub.f32 %v96, %v346
    %357 = vset.pattern.permute.xlu0 64
    %358 = vperm.xlu0 %357, %v321
    %v359 = vpop.permute.xlu0 %358
    %362 = vset.pattern.permute.xlu0 64
    %363 = vperm.xlu0 %362, %v323
    %v364 = vpop.permute.xlu0 %363
    %367 = vset.pattern.permute.xlu0 64
    %368 = vperm.xlu0 %367, %v325
    %v369 = vpop.permute.xlu0 %368
    %372 = vset.pattern.permute.xlu0 64
    %373 = vperm.xlu0 %372, %v327
    %v374 = vpop.permute.xlu0 %373
    %v376 = vmul.f32 %v348, %v359
    %v377 = vmul.f32 %v349, %v359
    %v378 = vmul.f32 %v350, %v364
    %v379 = vmul.f32 %v351, %v364
    %v380 = vmul.f32 %v352, %v369
    %v381 = vmul.f32 %v353, %v369
    %v382 = vmul.f32 %v354, %v374
    %v383 = vmul.f32 %v355, %v374
    %384 = vset.pattern.permute.xlu0 65
    %385 = vperm.xlu0 %384, %v97
    %v386 = vpop.permute.xlu0 %385
    %388 = vset.pattern.permute.xlu0 65
    %389 = vperm.xlu0 %388, %v98
    %v390 = vpop.permute.xlu0 %389
    %392 = vset.pattern.permute.xlu0 65
    %393 = vperm.xlu0 %392, %v99
    %v394 = vpop.permute.xlu0 %393
    %396 = vset.pattern.permute.xlu0 65
    %397 = vperm.xlu0 %396, %v100
    %v398 = vpop.permute.xlu0 %397
    %v400 = vadd.f32 %v376, %v386
    %v401 = vadd.f32 %v377, %v386
    %v402 = vadd.f32 %v378, %v390
    %v403 = vadd.f32 %v379, %v390
    %v404 = vadd.f32 %v380, %v394
    %v405 = vadd.f32 %v381, %v394
    %v406 = vadd.f32 %v382, %v398
    %v407 = vadd.f32 %v383, %v398
    %vm408 = vcmp.ge.f32.partialorder %v400, 0.0
    %vm409 = vcmp.ge.f32.partialorder %v401, 0.0
    %vm410 = vcmp.ge.f32.partialorder %v402, 0.0
    %vm411 = vcmp.ge.f32.partialorder %v403, 0.0
    %vm412 = vcmp.ge.f32.partialorder %v404, 0.0
    %vm413 = vcmp.ge.f32.partialorder %v405, 0.0
    %vm414 = vcmp.ge.f32.partialorder %v406, 0.0
    %vm415 = vcmp.ge.f32.partialorder %v407, 0.0
    %v416 = vsel %vm408, %v89, 0.0
    %v417 = vsel %vm409, %v90, 0.0
    %v418 = vsel %vm410, %v91, 0.0
    %v419 = vsel %vm411, %v92, 0.0
    %v420 = vsel %vm412, %v93, 0.0
    %v421 = vsel %vm413, %v94, 0.0
    %v422 = vsel %vm414, %v95, 0.0
    %v423 = vsel %vm415, %v96, 0.0
    %v424 = vld [vmem:[#allocation8 + $0x10] sm:$0xff]
    %v425 = vld [vmem:[#allocation8 + $0x18] sm:$0xff]
    %v426 = vld [vmem:[#allocation8] sm:$0xff]
    %v427 = vld [vmem:[#allocation8 + $0x8] sm:$0xff]
    %v429 = vsel %vm138, %v426, 0
    %v432 = vsel %vm138, %v427, 0
    %434 = vmatprep.subr.mxu0 0.0
    %435 = vmatpush1.msra.mxu0 0.0
    %436 = vmatprep.subr.mxu0 0.0
    %437 = vmatpush1.msra.mxu0 0.0
    %438 = vmatprep.subr.mxu0 0.0
    %439 = vmatpush1.msra.mxu0 0.0
    %440 = vmatprep.subr.mxu0 0.0
    %441 = vmatpush1.msra.mxu0 0.0
    %442 = vmatprep.subr.mxu0 0.0
    %443 = vmatpush1.msra.mxu0 0.0
    %444 = vmatprep.subr.mxu0 0.0
    %445 = vmatpush1.msra.mxu0 0.0
    %446 = vmatprep.subr.mxu0 0.0
    %447 = vmatpush1.msra.mxu0 0.0
    %448 = vmatprep.subr.mxu0 0.0
    %449 = vmatpush1.msra.mxu0 0.0
    %450 = vmatprep.subr.mxu0 0.0
    %451 = vmatpush1.msra.mxu0 0.0
    %452 = vmatprep.subr.mxu0 0.0
    %453 = vmatpush1.msra.mxu0 0.0
    %454 = vmatprep.subr.mxu0 0.0
    %455 = vmatpush1.msra.mxu0 0.0
    %456 = vmatprep.subr.mxu0 0.0
    %457 = vmatpush1.msra.mxu0 0.0
    %458 = vmatprep.subr.mxu0 %v423
    %459 = vmatpush1.msra.mxu0 %v422
    %460 = vmatprep.subr.mxu0 %v421
    %461 = vmatpush1.msra.mxu0 %v420
    %462 = vmatprep.subr.mxu0 %v419
    %463 = vmatpush1.msra.mxu0 %v418
    %464 = vmatprep.subr.mxu0 %v417
    %465 = vmatpush1.msra.mxu0 %v416
    %466 = vmatprep.subr.mxu0 0.0
    %467 = vmatpush2.msra.mxu0 0.0
    %468 = vmatprep.subr.mxu0 0.0
    %469 = vmatpush2.msra.mxu0 0.0
    %470 = vmatprep.subr.mxu0 0.0
    %471 = vmatpush2.msra.mxu0 0.0
    %472 = vmatprep.subr.mxu0 0.0
    %473 = vmatpush2.msra.mxu0 0.0
    %474 = vmatprep.subr.mxu0 0.0
    %475 = vmatpush2.msra.mxu0 0.0
    %476 = vmatprep.subr.mxu0 0.0
    %477 = vmatpush2.msra.mxu0 0.0
    %478 = vmatprep.subr.mxu0 0.0
    %479 = vmatpush2.msra.mxu0 0.0
    %480 = vmatprep.subr.mxu0 0.0
    %481 = vmatpush2.msra.mxu0 0.0
    %482 = vmatprep.subr.mxu0 0.0
    %483 = vmatpush2.msra.mxu0 0.0
    %484 = vmatprep.subr.mxu0 0.0
    %485 = vmatpush2.msra.mxu0 0.0
    %486 = vmatprep.subr.mxu0 0.0
    %487 = vmatpush2.msra.mxu0 0.0
    %488 = vmatprep.subr.mxu0 0.0
    %489 = vmatpush2.msra.mxu0 0.0
    %490 = vmatprep.subr.mxu0 0.0
    %491 = vmatpush2.msra.mxu0 0.0
    %492 = vmatprep.subr.mxu0 0.0
    %493 = vmatpush2.msra.mxu0 0.0
    %494 = vmatprep.subr.mxu0 0.0
    %495 = vmatpush2.msra.mxu0 0.0
    %496 = vmatprep.subr.mxu0 0.0
    %497 = vmatpush2.msra.mxu0 0.0
    %498 = vmatprep.mubr.f32.mxu0 0.0
    %499 = vmatmul.mubr.f32.gmra.mxu0 %v429
    %v500 = vpop.f32.mrf.mxu0
    %v501 = vadd.f32 0.0, %v500
    %v502 = vpop.f32.mrf.mxu0
    %v503 = vadd.f32 0.0, %v502
    %504 = vmatprep.mubr.f32.mxu0 0.0
    %505 = vmatmul.mubr.f32.gmra.mxu0 %v432
    %v506 = vpop.f32.mrf.mxu0
    %v507 = vadd.f32 0.0, %v506
    %v508 = vpop.f32.mrf.mxu0
    %v509 = vadd.f32 0.0, %v508
    %510 = vdwg.mxu0
    %v512 = vsel %vm138, %v424, 0
    %v515 = vsel %vm138, %v425, 0
    %517 = vmatprep.subr.mxu0 0.0
    %518 = vmatpush1.msra.mxu0 0.0
    %519 = vmatprep.subr.mxu0 0.0
    %520 = vmatpush1.msra.mxu0 0.0
    %521 = vmatprep.subr.mxu0 0.0
    %522 = vmatpush1.msra.mxu0 0.0
    %523 = vmatprep.subr.mxu0 0.0
    %524 = vmatpush1.msra.mxu0 0.0
    %525 = vmatprep.subr.mxu0 0.0
    %526 = vmatpush1.msra.mxu0 0.0
    %527 = vmatprep.subr.mxu0 0.0
    %528 = vmatpush1.msra.mxu0 0.0
    %529 = vmatprep.subr.mxu0 0.0
    %530 = vmatpush1.msra.mxu0 0.0
    %531 = vmatprep.subr.mxu0 0.0
    %532 = vmatpush1.msra.mxu0 0.0
    %533 = vmatprep.subr.mxu0 0.0
    %534 = vmatpush1.msra.mxu0 0.0
    %535 = vmatprep.subr.mxu0 0.0
    %536 = vmatpush1.msra.mxu0 0.0
    %537 = vmatprep.subr.mxu0 0.0
    %538 = vmatpush1.msra.mxu0 0.0
    %539 = vmatprep.subr.mxu0 0.0
    %540 = vmatpush1.msra.mxu0 0.0
    %541 = vmatprep.subr.mxu0 %v96
    %542 = vmatpush1.msra.mxu0 %v95
    %543 = vmatprep.subr.mxu0 %v94
    %544 = vmatpush1.msra.mxu0 %v93
    %545 = vmatprep.subr.mxu0 %v92
    %546 = vmatpush1.msra.mxu0 %v91
    %547 = vmatprep.subr.mxu0 %v90
    %548 = vmatpush1.msra.mxu0 %v89
    %549 = vmatprep.subr.mxu0 0.0
    %550 = vmatpush2.msra.mxu0 0.0
    %551 = vmatprep.subr.mxu0 0.0
    %552 = vmatpush2.msra.mxu0 0.0
    %553 = vmatprep.subr.mxu0 0.0
    %554 = vmatpush2.msra.mxu0 0.0
    %555 = vmatprep.subr.mxu0 0.0
    %556 = vmatpush2.msra.mxu0 0.0
    %557 = vmatprep.subr.mxu0 0.0
    %558 = vmatpush2.msra.mxu0 0.0
    %559 = vmatprep.subr.mxu0 0.0
    %560 = vmatpush2.msra.mxu0 0.0
    %561 = vmatprep.subr.mxu0 0.0
    %562 = vmatpush2.msra.mxu0 0.0
    %563 = vmatprep.subr.mxu0 0.0
    %564 = vmatpush2.msra.mxu0 0.0
    %565 = vmatprep.subr.mxu0 0.0
    %566 = vmatpush2.msra.mxu0 0.0
    %567 = vmatprep.subr.mxu0 0.0
    %568 = vmatpush2.msra.mxu0 0.0
    %569 = vmatprep.subr.mxu0 0.0
    %570 = vmatpush2.msra.mxu0 0.0
    %571 = vmatprep.subr.mxu0 0.0
    %572 = vmatpush2.msra.mxu0 0.0
    %573 = vmatprep.subr.mxu0 0.0
    %574 = vmatpush2.msra.mxu0 0.0
    %575 = vmatprep.subr.mxu0 0.0
    %576 = vmatpush2.msra.mxu0 0.0
    %577 = vmatprep.subr.mxu0 0.0
    %578 = vmatpush2.msra.mxu0 0.0
    %579 = vmatprep.subr.mxu0 0.0
    %580 = vmatpush2.msra.mxu0 0.0
    %581 = vmatprep.mubr.f32.mxu0 0.0
    %582 = vmatmul.mubr.f32.gmra.mxu0 %v512
    %v583 = vpop.f32.mrf.mxu0
    %v584 = vadd.f32 %v501, %v583
    %v585 = vpop.f32.mrf.mxu0
    %v586 = vadd.f32 %v503, %v585
    %587 = vmatprep.mubr.f32.mxu0 0.0
    %588 = vmatmul.mubr.f32.gmra.mxu0 %v515
    %v589 = vpop.f32.mrf.mxu0
    %v590 = vadd.f32 %v507, %v589
    %v591 = vpop.f32.mrf.mxu0
    %v592 = vadd.f32 %v509, %v591
    %593 = vdwg.mxu0
    %594 = vrot.lane.b32.xlu0 %v584, 17
    %v595 = vpop.permute.xlu0 %594
    %596 = vrot.lane.b32.xlu0 %v586, 17
    %v597 = vpop.permute.xlu0 %596
    %v598 = vlaneseq
    %v599 = vand.u32 %v598, 127
    %vm600 = vcmp.lt.s32.totalorder %v599, 17
    %v601 = vsel %vm600, %v595, %v597
    %v602 = vsel %vm600, %v597, %v595
    %v603 = vld [vmem:[#allocation11] ss:$8 sm:$0x3]
    %v605 = vlaneseq
    %v606 = vshrl.u32 %v605, 7
    %v607 = vsub.s32 0, %v606
    %v608 = vrot.slane %v603, %v607
    %v609 = vlaneseq
    %v610 = vshrl.u32 %v609, 7
    %v611 = vsub.s32 1, %v610
    %v612 = vrot.slane %v603, %v611
    %v615 = vmul.f32 %v602, %v608
    %v616 = vmul.f32 %v601, %v612
    %617 = vst [vmem:[#allocation2] sm:$0xff] %v615
    %618 = vst [vmem:[#allocation2 + $0x8] sm:$0xff] %v616
    %619 = vrot.lane.b32.xlu0 %v584, 16
    %v620 = vpop.permute.xlu0 %619
    %621 = vrot.lane.b32.xlu0 %v586, 16
    %v622 = vpop.permute.xlu0 %621
    %vm623 = vcmp.lt.s32.totalorder %v599, 16
    %v624 = vsel %vm623, %v620, %v622
    %v625 = vsel %vm623, %v622, %v620
    %s626 = scalar_lea.vmem [#allocation11], 1
    %v627 = vld [vmem:[%s626] ss:$8 sm:$0x3]
    %v629 = vlaneseq
    %v630 = vshrl.u32 %v629, 7
    %v631 = vsub.s32 0, %v630
    %v632 = vrot.slane %v627, %v631
    %v633 = vlaneseq
    %v634 = vshrl.u32 %v633, 7
    %v635 = vsub.s32 1, %v634
    %v636 = vrot.slane %v627, %v635
    %v639 = vmul.f32 %v625, %v632
    %v640 = vmul.f32 %v624, %v636
    %641 = vst [vmem:[#allocation2 + $0x10] sm:$0xff] %v639
    %642 = vst [vmem:[#allocation2 + $0x18] sm:$0xff] %v640
    %643 = vrot.lane.b32.xlu0 %v584, 15
    %v644 = vpop.permute.xlu0 %643
    %645 = vrot.lane.b32.xlu0 %v586, 15
    %v646 = vpop.permute.xlu0 %645
    %vm647 = vcmp.lt.s32.totalorder %v599, 15
    %v648 = vsel %vm647, %v644, %v646
    %v649 = vsel %vm647, %v646, %v644
    %s650 = scalar_lea.vmem [#allocation11], 2
    %v651 = vld [vmem:[%s650] ss:$8 sm:$0x3]
    %v653 = vlaneseq
    %v654 = vshrl.u32 %v653, 7
    %v655 = vsub.s32 0, %v654
    %v656 = vrot.slane %v651, %v655
    %v657 = vlaneseq
    %v658 = vshrl.u32 %v657, 7
    %v659 = vsub.s32 1, %v658
    %v660 = vrot.slane %v651, %v659
    %v663 = vmul.f32 %v649, %v656
    %v664 = vmul.f32 %v648, %v660
    %665 = vst [vmem:[#allocation2 + $0x20] sm:$0xff] %v663
    %666 = vst [vmem:[#allocation2 + $0x28] sm:$0xff] %v664
    %667 = vrot.lane.b32.xlu0 %v584, 1
    %v668 = vpop.permute.xlu0 %667
    %669 = vrot.lane.b32.xlu0 %v586, 1
    %v670 = vpop.permute.xlu0 %669
    %vm671 = vcmp.lt.s32.totalorder %v599, 1
    %v672 = vsel %vm671, %v668, %v670
    %v673 = vsel %vm671, %v670, %v668
    %s674 = scalar_lea.vmem [#allocation11], 3
    %v675 = vld [vmem:[%s674] ss:$8 sm:$0x3]
    %v677 = vlaneseq
    %v678 = vshrl.u32 %v677, 7
    %v679 = vsub.s32 0, %v678
    %v680 = vrot.slane %v675, %v679
    %v681 = vlaneseq
    %v682 = vshrl.u32 %v681, 7
    %v683 = vsub.s32 1, %v682
    %v684 = vrot.slane %v675, %v683
    %v687 = vmul.f32 %v673, %v680
    %v688 = vmul.f32 %v672, %v684
    %689 = vst [vmem:[#allocation2 + $0x30] sm:$0xff] %v687
    %690 = vst [vmem:[#allocation2 + $0x38] sm:$0xff] %v688
    %691 = vst [vmem:[#allocation2 + $0x40] sm:$0xff] %v584
    %692 = vst [vmem:[#allocation2 + $0x48] sm:$0xff] %v586
    %693 = vrot.lane.b32.xlu0 %v584, 127
    %v694 = vpop.permute.xlu0 %693
    %695 = vrot.lane.b32.xlu0 %v586, 127
    %v696 = vpop.permute.xlu0 %695
    %vm697 = vcmp.lt.s32.totalorder %v599, 127
    %v698 = vsel %vm697, %v694, %v696
    %v699 = vsel %vm697, %v696, %v694
    %s700 = scalar_lea.vmem [#allocation11], 5
    %v701 = vld [vmem:[%s700] ss:$8 sm:$0x3]
    %v703 = vlaneseq
    %v704 = vshrl.u32 %v703, 7
    %v705 = vsub.s32 0, %v704
    %v706 = vrot.slane %v701, %v705
    %v707 = vlaneseq
    %v708 = vshrl.u32 %v707, 7
    %v709 = vsub.s32 1, %v708
    %v710 = vrot.slane %v701, %v709
    %v713 = vmul.f32 %v698, %v706
    %v714 = vmul.f32 %v699, %v710
    %715 = vst [vmem:[#allocation2 + $0x50] sm:$0xff] %v713
    %716 = vst [vmem:[#allocation2 + $0x58] sm:$0xff] %v714
    %717 = vrot.lane.b32.xlu0 %v584, 113
    %v718 = vpop.permute.xlu0 %717
    %719 = vrot.lane.b32.xlu0 %v586, 113
    %v720 = vpop.permute.xlu0 %719
    %vm721 = vcmp.lt.s32.totalorder %v599, 113
    %v722 = vsel %vm721, %v718, %v720
    %v723 = vsel %vm721, %v720, %v718
    %s724 = scalar_lea.vmem [#allocation11], 6
    %v725 = vld [vmem:[%s724] ss:$8 sm:$0x3]
    %v727 = vlaneseq
    %v728 = vshrl.u32 %v727, 7
    %v729 = vsub.s32 0, %v728
    %v730 = vrot.slane %v725, %v729
    %v731 = vlaneseq
    %v732 = vshrl.u32 %v731, 7
    %v733 = vsub.s32 1, %v732
    %v734 = vrot.slane %v725, %v733
    %v737 = vmul.f32 %v722, %v730
    %v738 = vmul.f32 %v723, %v734
    %739 = vst [vmem:[#allocation2 + $0x60] sm:$0xff] %v737
    %740 = vst [vmem:[#allocation2 + $0x68] sm:$0xff] %v738
    %741 = vrot.lane.b32.xlu0 %v584, 112
    %v742 = vpop.permute.xlu0 %741
    %743 = vrot.lane.b32.xlu0 %v586, 112
    %v744 = vpop.permute.xlu0 %743
    %vm745 = vcmp.lt.s32.totalorder %v599, 112
    %v746 = vsel %vm745, %v742, %v744
    %v747 = vsel %vm745, %v744, %v742
    %s748 = scalar_lea.vmem [#allocation11], 7
    %v749 = vld [vmem:[%s748] ss:$8 sm:$0x3]
    %v751 = vlaneseq
    %v752 = vshrl.u32 %v751, 7
    %v753 = vsub.s32 0, %v752
    %v754 = vrot.slane %v749, %v753
    %v755 = vlaneseq
    %v756 = vshrl.u32 %v755, 7
    %v757 = vsub.s32 1, %v756
    %v758 = vrot.slane %v749, %v757
    %v761 = vmul.f32 %v746, %v754
    %v762 = vmul.f32 %v747, %v758
    %763 = vst [vmem:[#allocation2 + $0x70] sm:$0xff] %v761
    %764 = vst [vmem:[#allocation2 + $0x78] sm:$0xff] %v762
    %765 = vrot.lane.b32.xlu0 %v584, 111
    %v766 = vpop.permute.xlu0 %765
    %767 = vrot.lane.b32.xlu0 %v586, 111
    %v768 = vpop.permute.xlu0 %767
    %vm769 = vcmp.lt.s32.totalorder %v599, 111
    %v770 = vsel %vm769, %v766, %v768
    %v771 = vsel %vm769, %v768, %v766
    %s772 = scalar_lea.vmem [#allocation11], 16
    %v773 = vld [vmem:[%s772] ss:$8 sm:$0x3]
    %v775 = vlaneseq
    %v776 = vshrl.u32 %v775, 7
    %v777 = vsub.s32 0, %v776
    %v778 = vrot.slane %v773, %v777
    %v779 = vlaneseq
    %v780 = vshrl.u32 %v779, 7
    %v781 = vsub.s32 1, %v780
    %v782 = vrot.slane %v773, %v781
    %v785 = vmul.f32 %v770, %v778
    %v786 = vmul.f32 %v771, %v782
    %787 = vst [vmem:[#allocation2 + $0x80] sm:$0xff] %v785
    %788 = vst [vmem:[#allocation2 + $0x88] sm:$0xff] %v786
    %789 = vst [vmem:[#allocation2 + $0x90] sm:$0xff] %v590
    %790 = vst [vmem:[#allocation2 + $0x98] sm:$0xff] %v592
    %v791 = vld [vmem:[#allocation9] sm:$0xff]
    %v792 = vld [vmem:[#allocation9 + $0x8] sm:$0xff]
    %v793 = vld [vmem:[#allocation9 + $0x10] sm:$0xff]
    %v794 = vld [vmem:[#allocation9 + $0x18] sm:$0xff]
    %v795 = vld [vmem:[#allocation9 + $0x20] sm:$0xff]
    %v796 = vld [vmem:[#allocation9 + $0x28] sm:$0xff]
    %v797 = vld [vmem:[#allocation9 + $0x30] sm:$0xff]
    %v798 = vld [vmem:[#allocation9 + $0x38] sm:$0xff]
    %v799 = vld [vmem:[#allocation2] sm:$0xff]
    %v800 = vld [vmem:[#allocation2 + $0x8] sm:$0xff]
    %v801 = vld [vmem:[#allocation2 + $0x10] sm:$0xff]
    %v802 = vld [vmem:[#allocation2 + $0x18] sm:$0xff]
    %v803 = vld [vmem:[#allocation2 + $0x20] sm:$0xff]
    %v804 = vld [vmem:[#allocation2 + $0x28] sm:$0xff]
    %v805 = vld [vmem:[#allocation2 + $0x30] sm:$0xff]
    %v806 = vld [vmem:[#allocation2 + $0x38] sm:$0xff]
    %v807 = vld [vmem:[#allocation2 + $0x40] sm:$0xff]
    %v808 = vld [vmem:[#allocation2 + $0x48] sm:$0xff]
    %v809 = vld [vmem:[#allocation2 + $0x50] sm:$0xff]
    %v810 = vld [vmem:[#allocation2 + $0x58] sm:$0xff]
    %v811 = vld [vmem:[#allocation2 + $0x60] sm:$0xff]
    %v812 = vld [vmem:[#allocation2 + $0x68] sm:$0xff]
    %v813 = vld [vmem:[#allocation2 + $0x70] sm:$0xff]
    %v814 = vld [vmem:[#allocation2 + $0x78] sm:$0xff]
    %v815 = vld [vmem:[#allocation2 + $0x80] sm:$0xff]
    %v816 = vld [vmem:[#allocation2 + $0x88] sm:$0xff]
    %v817 = vld [vmem:[#allocation2 + $0x90] sm:$0xff]
    %v818 = vld [vmem:[#allocation2 + $0x98] sm:$0xff]
    %vm819 = vcmask 654336
    %v821 = vsel %vm819, %v791, 0
    %v824 = vsel %vm819, %v792, 0
    %v827 = vsel %vm819, %v793, 0
    %v830 = vsel %vm819, %v794, 0
    %v833 = vsel %vm819, %v795, 0
    %v836 = vsel %vm819, %v796, 0
    %v839 = vsel %vm819, %v797, 0
    %v842 = vsel %vm819, %v798, 0
    %844 = vmatprep.subr.mxu0 0.0
    %845 = vmatpush1.msra.mxu0 0.0
    %846 = vmatprep.subr.mxu0 0.0
    %847 = vmatpush1.msra.mxu0 0.0
    %848 = vmatprep.subr.mxu0 0.0
    %849 = vmatpush1.msra.mxu0 0.0
    %850 = vmatprep.subr.mxu0 0.0
    %851 = vmatpush1.msra.mxu0 0.0
    %852 = vmatprep.subr.mxu0 0.0
    %853 = vmatpush1.msra.mxu0 0.0
    %854 = vmatprep.subr.mxu0 0.0
    %855 = vmatpush1.msra.mxu0 0.0
    %856 = vmatprep.subr.mxu0 %v818
    %857 = vmatpush1.msra.mxu0 %v817
    %858 = vmatprep.subr.mxu0 %v816
    %859 = vmatpush1.msra.mxu0 %v815
    %860 = vmatprep.subr.mxu0 %v814
    %861 = vmatpush1.msra.mxu0 %v813
    %862 = vmatprep.subr.mxu0 %v812
    %863 = vmatpush1.msra.mxu0 %v811
    %864 = vmatprep.subr.mxu0 %v810
    %865 = vmatpush1.msra.mxu0 %v809
    %866 = vmatprep.subr.mxu0 %v808
    %867 = vmatpush1.msra.mxu0 %v807
    %868 = vmatprep.subr.mxu0 %v806
    %869 = vmatpush1.msra.mxu0 %v805
    %870 = vmatprep.subr.mxu0 %v804
    %871 = vmatpush1.msra.mxu0 %v803
    %872 = vmatprep.subr.mxu0 %v802
    %873 = vmatpush1.msra.mxu0 %v801
    %874 = vmatprep.subr.mxu0 %v800
    %875 = vmatpush1.msra.mxu0 %v799
    %876 = vmatprep.subr.mxu0 0.0
    %877 = vmatpush2.msra.mxu0 0.0
    %878 = vmatprep.subr.mxu0 0.0
    %879 = vmatpush2.msra.mxu0 0.0
    %880 = vmatprep.subr.mxu0 0.0
    %881 = vmatpush2.msra.mxu0 0.0
    %882 = vmatprep.subr.mxu0 0.0
    %883 = vmatpush2.msra.mxu0 0.0
    %884 = vmatprep.subr.mxu0 0.0
    %885 = vmatpush2.msra.mxu0 0.0
    %886 = vmatprep.subr.mxu0 0.0
    %887 = vmatpush2.msra.mxu0 0.0
    %888 = vmatprep.subr.mxu0 0.0
    %889 = vmatpush2.msra.mxu0 0.0
    %890 = vmatprep.subr.mxu0 0.0
    %891 = vmatpush2.msra.mxu0 0.0
    %892 = vmatprep.subr.mxu0 0.0
    %893 = vmatpush2.msra.mxu0 0.0
    %894 = vmatprep.subr.mxu0 0.0
    %895 = vmatpush2.msra.mxu0 0.0
    %896 = vmatprep.subr.mxu0 0.0
    %897 = vmatpush2.msra.mxu0 0.0
    %898 = vmatprep.subr.mxu0 0.0
    %899 = vmatpush2.msra.mxu0 0.0
    %900 = vmatprep.subr.mxu0 0.0
    %901 = vmatpush2.msra.mxu0 0.0
    %902 = vmatprep.subr.mxu0 0.0
    %903 = vmatpush2.msra.mxu0 0.0
    %904 = vmatprep.subr.mxu0 0.0
    %905 = vmatpush2.msra.mxu0 0.0
    %906 = vmatprep.subr.mxu0 0.0
    %907 = vmatpush2.msra.mxu0 0.0
    %908 = vmatprep.mubr.f32.mxu0 0.0
    %909 = vmatmul.mubr.f32.gmra.mxu0 %v821
    %v910 = vpop.f32.mrf.mxu0
    %v911 = vadd.f32 0.0, %v910
    %v912 = vpop.f32.mrf.mxu0
    %v913 = vadd.f32 0.0, %v912
    %914 = vmatprep.mubr.f32.mxu0 0.0
    %915 = vmatmul.mubr.f32.gmra.mxu0 %v824
    %v916 = vpop.f32.mrf.mxu0
    %v917 = vadd.f32 0.0, %v916
    %v918 = vpop.f32.mrf.mxu0
    %v919 = vadd.f32 0.0, %v918
    %920 = vmatprep.mubr.f32.mxu0 0.0
    %921 = vmatmul.mubr.f32.gmra.mxu0 %v827
    %v922 = vpop.f32.mrf.mxu0
    %v923 = vadd.f32 0.0, %v922
    %v924 = vpop.f32.mrf.mxu0
    %v925 = vadd.f32 0.0, %v924
    %926 = vmatprep.mubr.f32.mxu0 0.0
    %927 = vmatmul.mubr.f32.gmra.mxu0 %v830
    %v928 = vpop.f32.mrf.mxu0
    %v929 = vadd.f32 0.0, %v928
    %v930 = vpop.f32.mrf.mxu0
    %v931 = vadd.f32 0.0, %v930
    %932 = vmatprep.mubr.f32.mxu0 0.0
    %933 = vmatmul.mubr.f32.gmra.mxu0 %v833
    %v934 = vpop.f32.mrf.mxu0
    %v935 = vadd.f32 0.0, %v934
    %v936 = vpop.f32.mrf.mxu0
    %v937 = vadd.f32 0.0, %v936
    %938 = vmatprep.mubr.f32.mxu0 0.0
    %939 = vmatmul.mubr.f32.gmra.mxu0 %v836
    %v940 = vpop.f32.mrf.mxu0
    %v941 = vadd.f32 0.0, %v940
    %v942 = vpop.f32.mrf.mxu0
    %v943 = vadd.f32 0.0, %v942
    %944 = vmatprep.mubr.f32.mxu0 0.0
    %945 = vmatmul.mubr.f32.gmra.mxu0 %v839
    %v946 = vpop.f32.mrf.mxu0
    %v947 = vadd.f32 0.0, %v946
    %v948 = vpop.f32.mrf.mxu0
    %v949 = vadd.f32 0.0, %v948
    %950 = vmatprep.mubr.f32.mxu0 0.0
    %951 = vmatmul.mubr.f32.gmra.mxu0 %v842
    %v952 = vpop.f32.mrf.mxu0
    %v953 = vadd.f32 0.0, %v952
    %v954 = vpop.f32.mrf.mxu0
    %v955 = vadd.f32 0.0, %v954
    %956 = vdwg.mxu0
    %957 = vset.pattern.permute.xlu0 66
    %958 = vperm.xlu0 %957, %v97
    %v959 = vpop.permute.xlu0 %958
    %961 = vset.pattern.permute.xlu0 66
    %962 = vperm.xlu0 %961, %v98
    %v963 = vpop.permute.xlu0 %962
    %965 = vset.pattern.permute.xlu0 66
    %966 = vperm.xlu0 %965, %v99
    %v967 = vpop.permute.xlu0 %966
    %969 = vset.pattern.permute.xlu0 66
    %970 = vperm.xlu0 %969, %v100
    %v971 = vpop.permute.xlu0 %970
    %v973 = vadd.f32 %v911, %v959
    %v974 = vadd.f32 %v913, %v959
    %v975 = vadd.f32 %v917, %v963
    %v976 = vadd.f32 %v919, %v963
    %v977 = vadd.f32 %v923, %v967
    %v978 = vadd.f32 %v925, %v967
    %v979 = vadd.f32 %v929, %v971
    %v980 = vadd.f32 %v931, %v971
    %v981 = vadd.f32 %v973, %v974
    %982 = vadd.xlane.f32.xlu0 %v981
    %v983 = vpop.xlane.xlu0 %982
    %v984 = vadd.f32 %v975, %v976
    %985 = vadd.xlane.f32.xlu0 %v984
    %v986 = vpop.xlane.xlu0 %985
    %v987 = vadd.f32 %v977, %v978
    %988 = vadd.xlane.f32.xlu0 %v987
    %v989 = vpop.xlane.xlu0 %988
    %v990 = vadd.f32 %v979, %v980
    %991 = vadd.xlane.f32.xlu0 %v990
    %v992 = vpop.xlane.xlu0 %991
    %v993 = vrcp.pop 256.0
    %v994 = vmul.f32 %v983, %v993
    %v995 = vmul.f32 %v986, %v993
    %v996 = vmul.f32 %v989, %v993
    %v997 = vmul.f32 %v992, %v993
    %v998 = vadd.f32 %v935, %v937
    %999 = vadd.xlane.f32.xlu0 %v998
    %v1000 = vpop.xlane.xlu0 %999
    %v1001 = vadd.f32 %v941, %v943
    %1002 = vadd.xlane.f32.xlu0 %v1001
    %v1003 = vpop.xlane.xlu0 %1002
    %v1004 = vadd.f32 %v947, %v949
    %1005 = vadd.xlane.f32.xlu0 %v1004
    %v1006 = vpop.xlane.xlu0 %1005
    %v1007 = vadd.f32 %v953, %v955
    %1008 = vadd.xlane.f32.xlu0 %v1007
    %v1009 = vpop.xlane.xlu0 %1008
    %v1010 = vmul.f32 %v1000, %v993
    %v1011 = vmul.f32 %v1003, %v993
    %v1012 = vmul.f32 %v1006, %v993
    %v1013 = vmul.f32 %v1009, %v993
    %v1014 = vmax.f32 %v994, %v995
    %v1015 = vmax.f32 %v996, %v997
    %v1016 = vmax.f32 %v1014, %v1015
    %v1017 = vrot.slane %v1016, 4
    %v1018 = vmax.f32 %v1016, %v1017
    %v1019 = vrot.slane %v1018, 2
    %v1020 = vmax.f32 %v1018, %v1019
    %v1021 = vrot.slane %v1020, 1
    %v1022 = vmax.f32 %v1020, %v1021
    %s1023 = vtos %v1022
    %v1024 = vmax.f32 %v1010, %v1011
    %v1025 = vmax.f32 %v1012, %v1013
    %v1026 = vmax.f32 %v1024, %v1025
    %v1027 = vrot.slane %v1026, 4
    %v1028 = vmax.f32 %v1026, %v1027
    %v1029 = vrot.slane %v1028, 2
    %v1030 = vmax.f32 %v1028, %v1029
    %v1031 = vrot.slane %v1030, 1
    %v1032 = vmax.f32 %v1030, %v1031
    %s1033 = vtos %v1032
    %s1034 = smax.f32 %s1023, %s1033
    %v1035 = vstv %s1034
    %v1036 = vsub.f32 %v994, %v1035
    %v1037 = vsub.f32 %v995, %v1035
    %v1038 = vsub.f32 %v996, %v1035
    %v1039 = vsub.f32 %v997, %v1035
    %v1040 = vmul.f32 %v1036, 1.442695
    %v1041 = vpow.pop %v1040
    %v1042 = vmul.f32 %v1037, 1.442695
    %v1043 = vpow.pop %v1042
    %v1044 = vmul.f32 %v1038, 1.442695
    %v1045 = vpow.pop %v1044
    %v1046 = vmul.f32 %v1039, 1.442695
    %v1047 = vpow.pop %v1046
    %v1048 = vsub.f32 %v1010, %v1035
    %v1049 = vsub.f32 %v1011, %v1035
    %v1050 = vsub.f32 %v1012, %v1035
    %v1051 = vsub.f32 %v1013, %v1035
    %v1052 = vmul.f32 %v1048, 1.442695
    %v1053 = vpow.pop %v1052
    %v1054 = vmul.f32 %v1049, 1.442695
    %v1055 = vpow.pop %v1054
    %v1056 = vmul.f32 %v1050, 1.442695
    %v1057 = vpow.pop %v1056
    %v1058 = vmul.f32 %v1051, 1.442695
    %v1059 = vpow.pop %v1058
    %v1060 = vadd.f32 %v1041, %v1053
    %v1061 = vadd.f32 %v1043, %v1055
    %v1062 = vadd.f32 %v1045, %v1057
    %v1063 = vadd.f32 %v1047, %v1059
    %1064 = vrot.lane.b32.xlu0 %v97, 96
    %v1065 = vpop.permute.xlu0 %1064
    %1066 = vrot.lane.b32.xlu0 %v98, 96
    %v1067 = vpop.permute.xlu0 %1066
    %1068 = vrot.lane.b32.xlu0 %v99, 96
    %v1069 = vpop.permute.xlu0 %1068
    %1070 = vrot.lane.b32.xlu0 %v100, 96
    %v1071 = vpop.permute.xlu0 %1070
    %v1072 = vsel %vm138, %v1065, 0
    %v1074 = vsel %vm138, %v1067, 0
    %v1076 = vsel %vm138, %v1069, 0
    %v1078 = vsel %vm138, %v1071, 0
    %1080 = vmatprep.subr.mxu0 0.0
    %1081 = vmatpush1.msra.mxu0 0.0
    %1082 = vmatprep.subr.mxu0 0.0
    %1083 = vmatpush1.msra.mxu0 0.0
    %1084 = vmatprep.subr.mxu0 0.0
    %1085 = vmatpush1.msra.mxu0 0.0
    %1086 = vmatprep.subr.mxu0 0.0
    %1087 = vmatpush1.msra.mxu0 0.0
    %1088 = vmatprep.subr.mxu0 0.0
    %1089 = vmatpush1.msra.mxu0 0.0
    %1090 = vmatprep.subr.mxu0 0.0
    %1091 = vmatpush1.msra.mxu0 0.0
    %1092 = vmatprep.subr.mxu0 0.0
    %1093 = vmatpush1.msra.mxu0 0.0
    %1094 = vmatprep.subr.mxu0 0.0
    %1095 = vmatpush1.msra.mxu0 0.0
    %1096 = vmatprep.subr.mxu0 0.0
    %1097 = vmatpush1.msra.mxu0 0.0
    %1098 = vmatprep.subr.mxu0 0.0
    %1099 = vmatpush1.msra.mxu0 0.0
    %1100 = vmatprep.subr.mxu0 0.0
    %1101 = vmatpush1.msra.mxu0 0.0
    %1102 = vmatprep.subr.mxu0 0.0
    %1103 = vmatpush1.msra.mxu0 0.0
    %1104 = vmatprep.subr.mxu0 0.0
    %1105 = vmatpush1.msra.mxu0 %v1063
    %1106 = vmatprep.subr.mxu0 0.0
    %1107 = vmatpush1.msra.mxu0 %v1062
    %1108 = vmatprep.subr.mxu0 0.0
    %1109 = vmatpush1.msra.mxu0 %v1061
    %1110 = vmatprep.subr.mxu0 0.0
    %1111 = vmatpush1.msra.mxu0 %v1060
    %1112 = vmatprep.subr.mxu0 0.0
    %1113 = vmatpush2.msra.mxu0 0.0
    %1114 = vmatprep.subr.mxu0 0.0
    %1115 = vmatpush2.msra.mxu0 0.0
    %1116 = vmatprep.subr.mxu0 0.0
    %1117 = vmatpush2.msra.mxu0 0.0
    %1118 = vmatprep.subr.mxu0 0.0
    %1119 = vmatpush2.msra.mxu0 0.0
    %1120 = vmatprep.subr.mxu0 0.0
    %1121 = vmatpush2.msra.mxu0 0.0
    %1122 = vmatprep.subr.mxu0 0.0
    %1123 = vmatpush2.msra.mxu0 0.0
    %1124 = vmatprep.subr.mxu0 0.0
    %1125 = vmatpush2.msra.mxu0 0.0
    %1126 = vmatprep.subr.mxu0 0.0
    %1127 = vmatpush2.msra.mxu0 0.0
    %1128 = vmatprep.subr.mxu0 0.0
    %1129 = vmatpush2.msra.mxu0 0.0
    %1130 = vmatprep.subr.mxu0 0.0
    %1131 = vmatpush2.msra.mxu0 0.0
    %1132 = vmatprep.subr.mxu0 0.0
    %1133 = vmatpush2.msra.mxu0 0.0
    %1134 = vmatprep.subr.mxu0 0.0
    %1135 = vmatpush2.msra.mxu0 0.0
    %1136 = vmatprep.subr.mxu0 0.0
    %1137 = vmatpush2.msra.mxu0 0.0
    %1138 = vmatprep.subr.mxu0 0.0
    %1139 = vmatpush2.msra.mxu0 0.0
    %1140 = vmatprep.subr.mxu0 0.0
    %1141 = vmatpush2.msra.mxu0 0.0
    %1142 = vmatprep.subr.mxu0 0.0
    %1143 = vmatpush2.msra.mxu0 0.0
    %1144 = vmatprep.mubr.f32.mxu0 0.0
    %1145 = vmatmul.mubr.f32.gmra.mxu0 %v1072
    %v1146 = vpop.f32.mrf.mxu0
    %v1147 = vadd.f32 0.0, %v1146
    %v1148 = vpop.f32.mrf.mxu0
    %1149 = vmatprep.mubr.f32.mxu0 0.0
    %1150 = vmatmul.mubr.f32.gmra.mxu0 %v1074
    %v1151 = vpop.f32.mrf.mxu0
    %v1152 = vadd.f32 0.0, %v1151
    %v1153 = vpop.f32.mrf.mxu0
    %1154 = vmatprep.mubr.f32.mxu0 0.0
    %1155 = vmatmul.mubr.f32.gmra.mxu0 %v1076
    %v1156 = vpop.f32.mrf.mxu0
    %v1157 = vadd.f32 0.0, %v1156
    %v1158 = vpop.f32.mrf.mxu0
    %1159 = vmatprep.mubr.f32.mxu0 0.0
    %1160 = vmatmul.mubr.f32.gmra.mxu0 %v1078
    %v1161 = vpop.f32.mrf.mxu0
    %v1162 = vadd.f32 0.0, %v1161
    %v1163 = vpop.f32.mrf.mxu0
    %1164 = vdwg.mxu0
    %v1165 = vrcp.pop %v1147
    %v1166 = vmul.f32 1.0, %v1165
    %v1167 = vrcp.pop %v1152
    %v1168 = vmul.f32 1.0, %v1167
    %v1169 = vrcp.pop %v1157
    %v1170 = vmul.f32 1.0, %v1169
    %v1171 = vrcp.pop %v1162
    %v1172 = vmul.f32 1.0, %v1171
    %v1173 = vmul.f32 %v1041, %v1166
    %v1174 = vmul.f32 %v1043, %v1168
    %v1175 = vmul.f32 %v1045, %v1170
    %v1176 = vmul.f32 %v1047, %v1172
    %1178 = vset.pattern.permute.xlu0 0
    %1179 = vperm.xlu0 %1178, %v1173
    %v1180 = vpop.permute.xlu0 %1179
    %1183 = vset.pattern.permute.xlu0 0
    %1184 = vperm.xlu0 %1183, %v1174
    %v1185 = vpop.permute.xlu0 %1184
    %1188 = vset.pattern.permute.xlu0 0
    %1189 = vperm.xlu0 %1188, %v1175
    %v1190 = vpop.permute.xlu0 %1189
    %1193 = vset.pattern.permute.xlu0 0
    %1194 = vperm.xlu0 %1193, %v1176
    %v1195 = vpop.permute.xlu0 %1194
    %v1197 = vmul.f32 %v1180, %v973
    %v1198 = vmul.f32 %v1180, %v974
    %v1199 = vmul.f32 %v1185, %v975
    %v1200 = vmul.f32 %v1185, %v976
    %v1201 = vmul.f32 %v1190, %v977
    %v1202 = vmul.f32 %v1190, %v978
    %v1203 = vmul.f32 %v1195, %v979
    %v1204 = vmul.f32 %v1195, %v980
    %v1205 = vmul.f32 %v1053, %v1166
    %v1206 = vmul.f32 %v1055, %v1168
    %v1207 = vmul.f32 %v1057, %v1170
    %v1208 = vmul.f32 %v1059, %v1172
    %1210 = vset.pattern.permute.xlu0 0
    %1211 = vperm.xlu0 %1210, %v1205
    %v1212 = vpop.permute.xlu0 %1211
    %1215 = vset.pattern.permute.xlu0 0
    %1216 = vperm.xlu0 %1215, %v1206
    %v1217 = vpop.permute.xlu0 %1216
    %1220 = vset.pattern.permute.xlu0 0
    %1221 = vperm.xlu0 %1220, %v1207
    %v1222 = vpop.permute.xlu0 %1221
    %1225 = vset.pattern.permute.xlu0 0
    %1226 = vperm.xlu0 %1225, %v1208
    %v1227 = vpop.permute.xlu0 %1226
    %v1229 = vmul.f32 %v1212, %v935
    %v1230 = vmul.f32 %v1212, %v937
    %v1231 = vmul.f32 %v1217, %v941
    %v1232 = vmul.f32 %v1217, %v943
    %v1233 = vmul.f32 %v1222, %v947
    %v1234 = vmul.f32 %v1222, %v949
    %v1235 = vmul.f32 %v1227, %v953
    %v1236 = vmul.f32 %v1227, %v955
    %v1237 = vadd.f32 %v1197, %v1229
    %v1238 = vadd.f32 %v1198, %v1230
    %v1239 = vadd.f32 %v1199, %v1231
    %v1240 = vadd.f32 %v1200, %v1232
    %v1241 = vadd.f32 %v1201, %v1233
    %v1242 = vadd.f32 %v1202, %v1234
    %v1243 = vadd.f32 %v1203, %v1235
    %v1244 = vadd.f32 %v1204, %v1236
    %1245 = vst [vmem:[#allocation12] sm:$0xff] %v1237
    %1246 = vst [vmem:[#allocation12 + $0x8] sm:$0xff] %v1238
    %1247 = vst [vmem:[#allocation12 + $0x10] sm:$0xff] %v1239
    %1248 = vst [vmem:[#allocation12 + $0x18] sm:$0xff] %v1240
    %1249 = vst [vmem:[#allocation12 + $0x20] sm:$0xff] %v1241
    %1250 = vst [vmem:[#allocation12 + $0x28] sm:$0xff] %v1242
    %1251 = vst [vmem:[#allocation12 + $0x30] sm:$0xff] %v1243
    %1252 = vst [vmem:[#allocation12 + $0x38] sm:$0xff] %v1244
    // Predicated region
    $region42: #{tpu_custom_call.1} parent=1 // pred_check
      _
    $region43: #{tpu_custom_call.1} parent=1 // pred_check_branch
      %1254 = sbr.rel (0) target = $region45
    $region44: #{tpu_custom_call.1} parent=1 // pred_region
      %s1256 = ssub.s32 1024, 1024
      %1257 = vsyncadd [#allocation5], %s1256
      %s1258 = sshll.u32 [#allocation12], 4
      %s1259 = int_to_ptr.vmem [resolvable:$true] %s1258
      %1264 = dma.vmem_to_hbm [thread:$0]  %s1259, 1024, %s5, [#allocation5], 256, 256, 16
    $region45: #{tpu_custom_call.1} parent=1 // pred_fallthru
      _
    // Predicated region
    $region46: #{tpu_custom_call.1} parent=1 // pred_check
      _
    $region47: #{tpu_custom_call.1} parent=1 // pred_check_branch
      %1266 = sbr.rel (0) target = $region49
    $region48: #{tpu_custom_call.1} parent=1 // pred_region
      %1267 = dma.done [#allocation5], 1024
    $region49: #{tpu_custom_call.1} parent=1 // pred_fallthru
      _
    %1268 = vsyncpa [#allocation4], 1
    %1269 = vsyncpa [#allocation7], 1
    %1270 = vsyncpa [#allocation10], 1
    %1271 = vsyncpa [#allocation5], 1

</llo_original>
